<compile_context>
chip_gen: v7x
topology: tpu7x:2x2x1
jax: 0.10.0
libtpu: 0.0.40
codegen_flags: <defaults>
</compile_context>

<pallas_src>
import math

import jax
import jax.numpy as jnp
from jax import lax
from jax.experimental import pallas as pl
from jax.experimental.pallas import tpu as pltpu


def _round_up(x, m):
    return (x + m - 1) // m * m


def gru_recurrence_kernel(gates_ref, w_hid_ref, b_hn_ref, h_out_ref, h_scratch):
    """One grid step = one (batch-shard, time-chunk) tile of the serial recurrence.

    gates_ref : (time_chunk, batch_block, 3*H) precomputed x-gates (bf16/f32), bias folded
    w_hid_ref : (H, 3*H) hidden weights (bf16/f32), resident across the chunk
    b_hn_ref  : (1, H) f32 hidden "new" bias (must stay inside r*(...))
    h_out_ref : (batch_block, H) f32 final hidden state (written on last chunk only)
    h_scratch : (batch_block, H) f32 carried hidden state across time chunks
    """
    c = pl.program_id(1)                       # time-chunk index (sequential axis)

    @pl.when(c == 0)
    def _():
        h_scratch[...] = jnp.zeros_like(h_scratch)

    w = w_hid_ref[...]                         # stays resident across the time loop
    H = h_scratch.shape[-1]
    # Hoisted broadcast (JAX does not CSE broadcast_in_dim inside the loop).
    b_hn = jnp.broadcast_to(b_hn_ref[...].astype(jnp.float32), h_scratch.shape)

    n_t = gates_ref.shape[0]                   # static chunk length

    def step(t, h):
        # Single fused MXU call per timestep: (B_blk, H) @ (H, 3H), f32 accumulate.
        gh = jnp.dot(h.astype(w.dtype), w, preferred_element_type=jnp.float32)
        g = gates_ref[t].astype(jnp.float32)   # (B_blk, 3H); elementwise math in f32
        # 128-aligned lane slices (H % 128 == 0) — never cut a vreg tile.
        r = jax.nn.sigmoid(g[:, 0 * H:1 * H] + gh[:, 0 * H:1 * H])
        z = jax.nn.sigmoid(g[:, 1 * H:2 * H] + gh[:, 1 * H:2 * H])
        n = jnp.tanh(g[:, 2 * H:3 * H] + r * (gh[:, 2 * H:3 * H] + b_hn))
        return n + z * (h - n)

    # Bounded unroll: enough LLO visibility to hide MXU/EUP latency, no vreg spills.
    h = lax.fori_loop(0, n_t, step, h_scratch[...], unroll=min(8, n_t))
    h_scratch[...] = h

    @pl.when(c == pl.num_programs(1) - 1)
    def _():
        h_out_ref[...] = h.astype(h_out_ref.dtype)


def gru_model_forward(x_bsd, params, *, compute_dtype=jnp.bfloat16,
                      time_chunk=None, batch_block=None):
    """x_bsd: (batch, seq, in_size) -> (batch, out_size)."""
    w_in, b_in, w_hid, b_hid, w_fc, b_fc = params
    B, S, D = x_bsd.shape
    H = w_hid.shape[0]

    # --- Pad hidden to a lane-tile multiple and batch to a sublane-safe multiple.
    H_pad = _round_up(H, 128)
    B_pad = _round_up(B, 16)
    itemsize = jnp.dtype(compute_dtype).itemsize

    def pad_gate_axis(a):                      # (..., 3H) -> (..., 3*H_pad), per-gate zero pad
        lead = a.shape[:-1]
        a = a.reshape(lead + (3, H))
        a = jnp.pad(a, [(0, 0)] * len(lead) + [(0, 0), (0, H_pad - H)])
        return a.reshape(lead + (3 * H_pad,))

    w_in_p = pad_gate_axis(w_in)                                   # (D, 3*H_pad)
    b_in_p = pad_gate_axis(b_in)                                   # (1, 3*H_pad)
    b_hid_p = pad_gate_axis(b_hid)                                 # (1, 3*H_pad)
    w_hid_p = pad_gate_axis(jnp.pad(w_hid, ((0, H_pad - H), (0, 0))))   # (H_pad, 3*H_pad)
    x_p = jnp.pad(x_bsd, ((0, B_pad - B), (0, 0), (0, 0)))         # (B_pad, S, D)

    # Fold b_in and the reset/update halves of b_hid into one combined bias; the "new"
    # half must stay inside r*(...) and is passed separately.
    b_hid_rz = jnp.concatenate(
        [b_hid_p[:, :2 * H_pad], jnp.zeros((1, H_pad), jnp.float32)], axis=1)
    gate_bias = b_in_p + b_hid_rz                                  # (1, 3*H_pad)
    b_hn = b_hid_p[:, 2 * H_pad:3 * H_pad]                         # (1, H_pad), f32

    # --- Hoisted input projection: one big matmul over all timesteps (peak-MXU XLA),
    # time-major layout straight out of the einsum, bias folded, streamed in bf16.
    gates = (jnp.einsum('bsd,dg->sbg', x_p, w_in_p,
                        preferred_element_type=jnp.float32)
             + gate_bias).astype(compute_dtype)                    # (S, B_pad, 3*H_pad)
    w_hid_c = w_hid_p.astype(compute_dtype)                        # (H_pad, 3*H_pad)

    # --- Tiling: size gate blocks to a few MiB (double-buffered) and prefer >=2 batch
    # blocks when batch allows, so the "parallel" axis can use both v7x TensorCores.
    if batch_block is None:
        if B_pad >= 512 and B_pad % 256 == 0:
            batch_block = 256
        elif B_pad >= 32 and (B_pad // 2) % 16 == 0:
            batch_block = B_pad // 2
        else:
            batch_block = B_pad
    assert B_pad % batch_block == 0 and batch_block % 8 == 0
    n_bblocks = B_pad // batch_block

    if time_chunk is None:
        bytes_per_step = batch_block * 3 * H_pad * itemsize
        time_chunk = max(1, min(S, (2 * 1024 * 1024) // bytes_per_step))
    time_chunk = min(time_chunk, S)
    while S % time_chunk:                      # keep grid exact (no time padding: extra
        time_chunk -= 1                        # zero-input GRU steps would change h)
    n_chunks = S // time_chunk

    # --- VMEM budget: gates double-buffered + weights double-buffered + f32 scratch/out.
    gate_block_bytes = time_chunk * batch_block * 3 * H_pad * itemsize
    w_bytes = H_pad * 3 * H_pad * itemsize
    resident = 2 * gate_block_bytes + 2 * w_bytes + 3 * batch_block * H_pad * 4 + 2 * H_pad * 4
    vmem_limit = int(min(64 * 1024 * 1024, max(2 * resident, 4 * 1024 * 1024)))
    # TODO(synk): for very large H (>~1.5k), single-buffer the weights by staging them once
    # via memory_space=pl.ANY + make_async_copy instead of the constant-index BlockSpec.

    gate_spec = pl.BlockSpec((time_chunk, batch_block, 3 * H_pad), lambda b, c: (c, b, 0))
    wt_spec = pl.BlockSpec((H_pad, 3 * H_pad), lambda b, c: (0, 0))
    bias_spec = pl.BlockSpec((1, H_pad), lambda b, c: (0, 0))

    cost = pl.CostEstimate(
        flops=2 * S * B_pad * H_pad * 3 * H_pad,
        transcendentals=3 * S * B_pad * H_pad,
        bytes_accessed=S * B_pad * 3 * H_pad * itemsize + 3 * H_pad * H_pad * itemsize
                       + B_pad * H_pad * 4,
    )

    h_last = pl.pallas_call(
        gru_recurrence_kernel,
        out_shape=jax.ShapeDtypeStruct((B_pad, H_pad), jnp.float32),
        grid_spec=pltpu.PrefetchScalarGridSpec(
            num_scalar_prefetch=0,
            grid=(n_bblocks, n_chunks),
            in_specs=[gate_spec, wt_spec, bias_spec],
            out_specs=pl.BlockSpec((batch_block, H_pad), lambda b, c: (b, 0)),
            scratch_shapes=[pltpu.VMEM((batch_block, H_pad), jnp.float32)],
        ),
        compiler_params=pltpu.CompilerParams(
            # Batch shards are independent (v7x megacore); time is strictly sequential.
            dimension_semantics=("parallel", "arbitrary"),
            vmem_limit_bytes=vmem_limit),
        cost_estimate=cost,
    )(gates, w_hid_c, b_hn)

    # Final fc stays in XLA: W_fc is used once; no reason to hold it resident in VMEM for
    # the whole sequence or pay the O<128 masked-store penalty in-kernel.
    return h_last[:B, :H] @ w_fc + b_fc


def init_params(key, in_size, hid_size, out_size):
    std = 1.0 / math.sqrt(hid_size)
    ks = jax.random.split(key, 6)
    # Stored pre-transposed relative to torch.nn.Linear (out, in) -> (in, out).
    w_in = jax.random.uniform(ks[0], (in_size, 3 * hid_size), jnp.float32, -std, std)
    b_in = jax.random.uniform(ks[1], (1, 3 * hid_size), jnp.float32, -std, std)
    w_hid = jax.random.uniform(ks[2], (hid_size, 3 * hid_size), jnp.float32, -std, std)
    b_hid = jax.random.uniform(ks[3], (1, 3 * hid_size), jnp.float32, -std, std)
    w_fc = jax.random.uniform(ks[4], (hid_size, out_size), jnp.float32, -std, std)
    b_fc = jax.random.uniform(ks[5], (1, out_size), jnp.float32, -std, std)
    return (w_in, b_in, w_hid, b_hid, w_fc, b_fc)


def reference_forward(x_bsd, params):
    """Pure-JAX f32 reference mirroring the PyTorch forward exactly."""
    w_in, b_in, w_hid, b_hid, w_fc, b_fc = params
    B, S, D = x_bsd.shape
    H = w_hid.shape[0]
    h = jnp.zeros((B, H), jnp.float32)
    for t in range(S):
        x_t = x_bsd[:, t, :]
        gx = x_t @ w_in + b_in
        gh = h @ w_hid + b_hid
        xr, xz, xn = gx[:, :H], gx[:, H:2 * H], gx[:, 2 * H:]
        hr, hz, hn = gh[:, :H], gh[:, H:2 * H], gh[:, 2 * H:]
        r = jax.nn.sigmoid(xr + hr)
        z = jax.nn.sigmoid(xz + hz)
        n = jnp.tanh(xn + r * hn)
        h = n + z * (h - n)
    return h @ w_fc + b_fc


if __name__ == "__main__":
    batch, seq, in_size, hid_size, out_size = 4, 8, 16, 32, 8

    key = jax.random.PRNGKey(0)
    k_x, k_p = jax.random.split(key)
    x = jax.random.normal(k_x, (batch, seq, in_size), jnp.float32)
    params = init_params(k_p, in_size, hid_size, out_size)

    ref = reference_forward(x, params)

    # f32-streamed path: tight check against the torch-faithful reference.
    out_f32 = jax.block_until_ready(
        gru_model_forward(x, params, compute_dtype=jnp.float32))
    assert out_f32.shape == (batch, out_size)
    assert jnp.allclose(out_f32, ref, atol=1e-4, rtol=1e-4), "f32 kernel mismatch vs reference"

    # bf16-streamed path (production default): loose tolerance — bf16 operand quantization
    # of the streamed gates / hidden weights, f32 accumulation and activations.
    out_bf16 = jax.block_until_ready(gru_model_forward(x, params))
    assert out_bf16.shape == (batch, out_size)
    assert jnp.allclose(out_bf16, ref, atol=3e-2, rtol=3e-2), "bf16 kernel mismatch vs reference"

    print("KERNEL_OK")
</pallas_src>

<mosaic_0001>
module attributes {stable_mosaic.version = 11 : i64} {
  func.func @gru_recurrence_kernel(%arg0: i32, %arg1: i32, %arg2: memref<8x16x384xf32, #tpu.memory_space<vmem>>, %arg3: memref<128x384xf32, #tpu.memory_space<vmem>>, %arg4: memref<1x128xf32, #tpu.memory_space<vmem>>, %arg5: memref<16x128xf32, #tpu.memory_space<vmem>>, %arg6: memref<16x128xf32, #tpu.memory_space<vmem>>) attributes {dimension_semantics = [#tpu.dimension_semantics<parallel>, #tpu.dimension_semantics<arbitrary>], iteration_bounds = array<i64: 1, 1>, scalar_prefetch = 0 : i64, scratch_operands = 1 : i64, tpu.core_type = #tpu.core_type<tc>, window_params = [{transform_indices = @transform_0, window_bounds = array<i64: 8, 16, 384>}, {pipeline_mode = #tpu.pipeline_mode<synchronous>, transform_indices = @transform_1, window_bounds = array<i64: 128, 384>}, {pipeline_mode = #tpu.pipeline_mode<synchronous>, transform_indices = @transform_2, window_bounds = array<i64: 1, 128>}, {transform_indices = @transform_3, window_bounds = array<i64: 16, 128>}]} {
    %c0_i32 = arith.constant 0 : i32
    %0 = arith.cmpi eq, %arg1, %c0_i32 : i32
    %1 = arith.extui %0 : i1 to i32
    %c0_i32_0 = arith.constant 0 : i32
    %2 = arith.cmpi ne, %1, %c0_i32_0 : i32
    scf.if %2 {
      %cst_50 = arith.constant 0.000000e+00 : f32
      %244 = vector.broadcast %cst_50 : f32 to vector<16x128xf32>
      %c0_51 = arith.constant 0 : index
      %c0_52 = arith.constant 0 : index
      %245 = vector.load %arg6[%c0_51, %c0_52] : memref<16x128xf32, #tpu.memory_space<vmem>>, vector<16x128xf32>
      tpu.vector_store %arg6[%c0_51, %c0_52], %244 {strides = array<i32>} : memref<16x128xf32, #tpu.memory_space<vmem>>, vector<16x128xf32>,
    } else {
    }
    %c0 = arith.constant 0 : index
    %c0_1 = arith.constant 0 : index
    %3 = vector.load %arg3[%c0, %c0_1] : memref<128x384xf32, #tpu.memory_space<vmem>>, vector<128x384xf32>
    %c0_2 = arith.constant 0 : index
    %c0_3 = arith.constant 0 : index
    %4 = vector.load %arg4[%c0_2, %c0_3] : memref<1x128xf32, #tpu.memory_space<vmem>>, vector<1x128xf32>
    %5 = vector.shape_cast %4 : vector<1x128xf32> to vector<1x128xf32>
    %6 = vector.broadcast %5 : vector<1x128xf32> to vector<16x128xf32>
    %c0_4 = arith.constant 0 : index
    %c0_5 = arith.constant 0 : index
    %7 = vector.load %arg6[%c0_4, %c0_5] : memref<16x128xf32, #tpu.memory_space<vmem>>, vector<16x128xf32>
    %c0_i32_6 = arith.constant 0 : i32
    %cst = arith.constant dense<0.000000e+00> : vector<16x384xf32>
    %8 = tpu.matmul %7, %3, %cst {dimension_numbers = #tpu.dot_dimension_numbers<[1], [0], [0], [1], [0, 0, 1, 1], [], []>} : vector<16x128xf32>, vector<128x384xf32>, vector<16x384xf32> -> vector<16x384xf32>
    %9 = arith.index_cast %c0_i32_6 : i32 to index
    %c0_7 = arith.constant 0 : index
    %c0_8 = arith.constant 0 : index
    %10 = vector.load %arg2[%9, %c0_7, %c0_8] : memref<8x16x384xf32, #tpu.memory_space<vmem>>, vector<1x16x384xf32>
    %11 = vector.shape_cast %10 : vector<1x16x384xf32> to vector<16x384xf32>
    %12 = vector.extract_strided_slice %11 {offsets = [0, 0], sizes = [16, 128], strides = [1, 1]} : vector<16x384xf32> to vector<16x128xf32>
    %13 = vector.extract_strided_slice %8 {offsets = [0, 0], sizes = [16, 128], strides = [1, 1]} : vector<16x384xf32> to vector<16x128xf32>
    %14 = arith.addf %12, %13 : vector<16x128xf32>
    %15 = arith.negf %14 : vector<16x128xf32>
    %16 = math.exp %15 : vector<16x128xf32>
    %cst_9 = arith.constant 1.000000e+00 : f32
    %17 = vector.broadcast %cst_9 : f32 to vector<16x128xf32>
    %18 = arith.addf %17, %16 : vector<16x128xf32>
    %19 = arith.divf %17, %18 : vector<16x128xf32>
    %20 = vector.extract_strided_slice %11 {offsets = [0, 128], sizes = [16, 128], strides = [1, 1]} : vector<16x384xf32> to vector<16x128xf32>
    %21 = vector.extract_strided_slice %8 {offsets = [0, 128], sizes = [16, 128], strides = [1, 1]} : vector<16x384xf32> to vector<16x128xf32>
    %22 = arith.addf %20, %21 : vector<16x128xf32>
    %23 = arith.negf %22 : vector<16x128xf32>
    %24 = math.exp %23 : vector<16x128xf32>
    %cst_10 = arith.constant 1.000000e+00 : f32
    %25 = vector.broadcast %cst_10 : f32 to vector<16x128xf32>
    %26 = arith.addf %25, %24 : vector<16x128xf32>
    %27 = arith.divf %25, %26 : vector<16x128xf32>
    %28 = vector.extract_strided_slice %11 {offsets = [0, 256], sizes = [16, 128], strides = [1, 1]} : vector<16x384xf32> to vector<16x128xf32>
    %29 = vector.extract_strided_slice %8 {offsets = [0, 256], sizes = [16, 128], strides = [1, 1]} : vector<16x384xf32> to vector<16x128xf32>
    %30 = arith.addf %29, %6 : vector<16x128xf32>
    %31 = arith.mulf %19, %30 : vector<16x128xf32>
    %32 = arith.addf %28, %31 : vector<16x128xf32>
    %33 = math.tanh %32 : vector<16x128xf32>
    %34 = arith.subf %7, %33 : vector<16x128xf32>
    %35 = arith.mulf %27, %34 : vector<16x128xf32>
    %36 = arith.addf %33, %35 : vector<16x128xf32>
    %c1_i32 = arith.constant 1 : i32
    %cst_11 = arith.constant dense<0.000000e+00> : vector<16x384xf32>
    %37 = tpu.matmul %36, %3, %cst_11 {dimension_numbers = #tpu.dot_dimension_numbers<[1], [0], [0], [1], [0, 0, 1, 1], [], []>} : vector<16x128xf32>, vector<128x384xf32>, vector<16x384xf32> -> vector<16x384xf32>
    %38 = arith.index_cast %c1_i32 : i32 to index
    %c0_12 = arith.constant 0 : index
    %c0_13 = arith.constant 0 : index
    %39 = vector.load %arg2[%38, %c0_12, %c0_13] : memref<8x16x384xf32, #tpu.memory_space<vmem>>, vector<1x16x384xf32>
    %40 = vector.shape_cast %39 : vector<1x16x384xf32> to vector<16x384xf32>
    %41 = vector.extract_strided_slice %40 {offsets = [0, 0], sizes = [16, 128], strides = [1, 1]} : vector<16x384xf32> to vector<16x128xf32>
    %42 = vector.extract_strided_slice %37 {offsets = [0, 0], sizes = [16, 128], strides = [1, 1]} : vector<16x384xf32> to vector<16x128xf32>
    %43 = arith.addf %41, %42 : vector<16x128xf32>
    %44 = arith.negf %43 : vector<16x128xf32>
    %45 = math.exp %44 : vector<16x128xf32>
    %cst_14 = arith.constant 1.000000e+00 : f32
    %46 = vector.broadcast %cst_14 : f32 to vector<16x128xf32>
    %47 = arith.addf %46, %45 : vector<16x128xf32>
    %48 = arith.divf %46, %47 : vector<16x128xf32>
    %49 = vector.extract_strided_slice %40 {offsets = [0, 128], sizes = [16, 128], strides = [1, 1]} : vector<16x384xf32> to vector<16x128xf32>
    %50 = vector.extract_strided_slice %37 {offsets = [0, 128], sizes = [16, 128], strides = [1, 1]} : vector<16x384xf32> to vector<16x128xf32>
    %51 = arith.addf %49, %50 : vector<16x128xf32>
    %52 = arith.negf %51 : vector<16x128xf32>
    %53 = math.exp %52 : vector<16x128xf32>
    %cst_15 = arith.constant 1.000000e+00 : f32
    %54 = vector.broadcast %cst_15 : f32 to vector<16x128xf32>
    %55 = arith.addf %54, %53 : vector<16x128xf32>
    %56 = arith.divf %54, %55 : vector<16x128xf32>
    %57 = vector.extract_strided_slice %40 {offsets = [0, 256], sizes = [16, 128], strides = [1, 1]} : vector<16x384xf32> to vector<16x128xf32>
    %58 = vector.extract_strided_slice %37 {offsets = [0, 256], sizes = [16, 128], strides = [1, 1]} : vector<16x384xf32> to vector<16x128xf32>
    %59 = arith.addf %58, %6 : vector<16x128xf32>
    %60 = arith.mulf %48, %59 : vector<16x128xf32>
    %61 = arith.addf %57, %60 : vector<16x128xf32>
    %62 = math.tanh %61 : vector<16x128xf32>
    %63 = arith.subf %36, %62 : vector<16x128xf32>
    %64 = arith.mulf %56, %63 : vector<16x128xf32>
    %65 = arith.addf %62, %64 : vector<16x128xf32>
    %c2_i32 = arith.constant 2 : i32
    %cst_16 = arith.constant dense<0.000000e+00> : vector<16x384xf32>
    %66 = tpu.matmul %65, %3, %cst_16 {dimension_numbers = #tpu.dot_dimension_numbers<[1], [0], [0], [1], [0, 0, 1, 1], [], []>} : vector<16x128xf32>, vector<128x384xf32>, vector<16x384xf32> -> vector<16x384xf32>
    %67 = arith.index_cast %c2_i32 : i32 to index
    %c0_17 = arith.constant 0 : index
    %c0_18 = arith.constant 0 : index
    %68 = vector.load %arg2[%67, %c0_17, %c0_18] : memref<8x16x384xf32, #tpu.memory_space<vmem>>, vector<1x16x384xf32>
    %69 = vector.shape_cast %68 : vector<1x16x384xf32> to vector<16x384xf32>
    %70 = vector.extract_strided_slice %69 {offsets = [0, 0], sizes = [16, 128], strides = [1, 1]} : vector<16x384xf32> to vector<16x128xf32>
    %71 = vector.extract_strided_slice %66 {offsets = [0, 0], sizes = [16, 128], strides = [1, 1]} : vector<16x384xf32> to vector<16x128xf32>
    %72 = arith.addf %70, %71 : vector<16x128xf32>
    %73 = arith.negf %72 : vector<16x128xf32>
    %74 = math.exp %73 : vector<16x128xf32>
    %cst_19 = arith.constant 1.000000e+00 : f32
    %75 = vector.broadcast %cst_19 : f32 to vector<16x128xf32>
    %76 = arith.addf %75, %74 : vector<16x128xf32>
    %77 = arith.divf %75, %76 : vector<16x128xf32>
    %78 = vector.extract_strided_slice %69 {offsets = [0, 128], sizes = [16, 128], strides = [1, 1]} : vector<16x384xf32> to vector<16x128xf32>
    %79 = vector.extract_strided_slice %66 {offsets = [0, 128], sizes = [16, 128], strides = [1, 1]} : vector<16x384xf32> to vector<16x128xf32>
    %80 = arith.addf %78, %79 : vector<16x128xf32>
    %81 = arith.negf %80 : vector<16x128xf32>
    %82 = math.exp %81 : vector<16x128xf32>
    %cst_20 = arith.constant 1.000000e+00 : f32
    %83 = vector.broadcast %cst_20 : f32 to vector<16x128xf32>
    %84 = arith.addf %83, %82 : vector<16x128xf32>
    %85 = arith.divf %83, %84 : vector<16x128xf32>
    %86 = vector.extract_strided_slice %69 {offsets = [0, 256], sizes = [16, 128], strides = [1, 1]} : vector<16x384xf32> to vector<16x128xf32>
    %87 = vector.extract_strided_slice %66 {offsets = [0, 256], sizes = [16, 128], strides = [1, 1]} : vector<16x384xf32> to vector<16x128xf32>
    %88 = arith.addf %87, %6 : vector<16x128xf32>
    %89 = arith.mulf %77, %88 : vector<16x128xf32>
    %90 = arith.addf %86, %89 : vector<16x128xf32>
    %91 = math.tanh %90 : vector<16x128xf32>
    %92 = arith.subf %65, %91 : vector<16x128xf32>
    %93 = arith.mulf %85, %92 : vector<16x128xf32>
    %94 = arith.addf %91, %93 : vector<16x128xf32>
    %c3_i32 = arith.constant 3 : i32
    %cst_21 = arith.constant dense<0.000000e+00> : vector<16x384xf32>
    %95 = tpu.matmul %94, %3, %cst_21 {dimension_numbers = #tpu.dot_dimension_numbers<[1], [0], [0], [1], [0, 0, 1, 1], [], []>} : vector<16x128xf32>, vector<128x384xf32>, vector<16x384xf32> -> vector<16x384xf32>
    %96 = arith.index_cast %c3_i32 : i32 to index
    %c0_22 = arith.constant 0 : index
    %c0_23 = arith.constant 0 : index
    %97 = vector.load %arg2[%96, %c0_22, %c0_23] : memref<8x16x384xf32, #tpu.memory_space<vmem>>, vector<1x16x384xf32>
    %98 = vector.shape_cast %97 : vector<1x16x384xf32> to vector<16x384xf32>
    %99 = vector.extract_strided_slice %98 {offsets = [0, 0], sizes = [16, 128], strides = [1, 1]} : vector<16x384xf32> to vector<16x128xf32>
    %100 = vector.extract_strided_slice %95 {offsets = [0, 0], sizes = [16, 128], strides = [1, 1]} : vector<16x384xf32> to vector<16x128xf32>
    %101 = arith.addf %99, %100 : vector<16x128xf32>
    %102 = arith.negf %101 : vector<16x128xf32>
    %103 = math.exp %102 : vector<16x128xf32>
    %cst_24 = arith.constant 1.000000e+00 : f32
    %104 = vector.broadcast %cst_24 : f32 to vector<16x128xf32>
    %105 = arith.addf %104, %103 : vector<16x128xf32>
    %106 = arith.divf %104, %105 : vector<16x128xf32>
    %107 = vector.extract_strided_slice %98 {offsets = [0, 128], sizes = [16, 128], strides = [1, 1]} : vector<16x384xf32> to vector<16x128xf32>
    %108 = vector.extract_strided_slice %95 {offsets = [0, 128], sizes = [16, 128], strides = [1, 1]} : vector<16x384xf32> to vector<16x128xf32>
    %109 = arith.addf %107, %108 : vector<16x128xf32>
    %110 = arith.negf %109 : vector<16x128xf32>
    %111 = math.exp %110 : vector<16x128xf32>
    %cst_25 = arith.constant 1.000000e+00 : f32
    %112 = vector.broadcast %cst_25 : f32 to vector<16x128xf32>
    %113 = arith.addf %112, %111 : vector<16x128xf32>
    %114 = arith.divf %112, %113 : vector<16x128xf32>
    %115 = vector.extract_strided_slice %98 {offsets = [0, 256], sizes = [16, 128], strides = [1, 1]} : vector<16x384xf32> to vector<16x128xf32>
    %116 = vector.extract_strided_slice %95 {offsets = [0, 256], sizes = [16, 128], strides = [1, 1]} : vector<16x384xf32> to vector<16x128xf32>
    %117 = arith.addf %116, %6 : vector<16x128xf32>
    %118 = arith.mulf %106, %117 : vector<16x128xf32>
    %119 = arith.addf %115, %118 : vector<16x128xf32>
    %120 = math.tanh %119 : vector<16x128xf32>
    %121 = arith.subf %94, %120 : vector<16x128xf32>
    %122 = arith.mulf %114, %121 : vector<16x128xf32>
    %123 = arith.addf %120, %122 : vector<16x128xf32>
    %c4_i32 = arith.constant 4 : i32
    %cst_26 = arith.constant dense<0.000000e+00> : vector<16x384xf32>
    %124 = tpu.matmul %123, %3, %cst_26 {dimension_numbers = #tpu.dot_dimension_numbers<[1], [0], [0], [1], [0, 0, 1, 1], [], []>} : vector<16x128xf32>, vector<128x384xf32>, vector<16x384xf32> -> vector<16x384xf32>
    %125 = arith.index_cast %c4_i32 : i32 to index
    %c0_27 = arith.constant 0 : index
    %c0_28 = arith.constant 0 : index
    %126 = vector.load %arg2[%125, %c0_27, %c0_28] : memref<8x16x384xf32, #tpu.memory_space<vmem>>, vector<1x16x384xf32>
    %127 = vector.shape_cast %126 : vector<1x16x384xf32> to vector<16x384xf32>
    %128 = vector.extract_strided_slice %127 {offsets = [0, 0], sizes = [16, 128], strides = [1, 1]} : vector<16x384xf32> to vector<16x128xf32>
    %129 = vector.extract_strided_slice %124 {offsets = [0, 0], sizes = [16, 128], strides = [1, 1]} : vector<16x384xf32> to vector<16x128xf32>
    %130 = arith.addf %128, %129 : vector<16x128xf32>
    %131 = arith.negf %130 : vector<16x128xf32>
    %132 = math.exp %131 : vector<16x128xf32>
    %cst_29 = arith.constant 1.000000e+00 : f32
    %133 = vector.broadcast %cst_29 : f32 to vector<16x128xf32>
    %134 = arith.addf %133, %132 : vector<16x128xf32>
    %135 = arith.divf %133, %134 : vector<16x128xf32>
    %136 = vector.extract_strided_slice %127 {offsets = [0, 128], sizes = [16, 128], strides = [1, 1]} : vector<16x384xf32> to vector<16x128xf32>
    %137 = vector.extract_strided_slice %124 {offsets = [0, 128], sizes = [16, 128], strides = [1, 1]} : vector<16x384xf32> to vector<16x128xf32>
    %138 = arith.addf %136, %137 : vector<16x128xf32>
    %139 = arith.negf %138 : vector<16x128xf32>
    %140 = math.exp %139 : vector<16x128xf32>
    %cst_30 = arith.constant 1.000000e+00 : f32
    %141 = vector.broadcast %cst_30 : f32 to vector<16x128xf32>
    %142 = arith.addf %141, %140 : vector<16x128xf32>
    %143 = arith.divf %141, %142 : vector<16x128xf32>
    %144 = vector.extract_strided_slice %127 {offsets = [0, 256], sizes = [16, 128], strides = [1, 1]} : vector<16x384xf32> to vector<16x128xf32>
    %145 = vector.extract_strided_slice %124 {offsets = [0, 256], sizes = [16, 128], strides = [1, 1]} : vector<16x384xf32> to vector<16x128xf32>
    %146 = arith.addf %145, %6 : vector<16x128xf32>
    %147 = arith.mulf %135, %146 : vector<16x128xf32>
    %148 = arith.addf %144, %147 : vector<16x128xf32>
    %149 = math.tanh %148 : vector<16x128xf32>
    %150 = arith.subf %123, %149 : vector<16x128xf32>
    %151 = arith.mulf %143, %150 : vector<16x128xf32>
    %152 = arith.addf %149, %151 : vector<16x128xf32>
    %c5_i32 = arith.constant 5 : i32
    %cst_31 = arith.constant dense<0.000000e+00> : vector<16x384xf32>
    %153 = tpu.matmul %152, %3, %cst_31 {dimension_numbers = #tpu.dot_dimension_numbers<[1], [0], [0], [1], [0, 0, 1, 1], [], []>} : vector<16x128xf32>, vector<128x384xf32>, vector<16x384xf32> -> vector<16x384xf32>
    %154 = arith.index_cast %c5_i32 : i32 to index
    %c0_32 = arith.constant 0 : index
    %c0_33 = arith.constant 0 : index
    %155 = vector.load %arg2[%154, %c0_32, %c0_33] : memref<8x16x384xf32, #tpu.memory_space<vmem>>, vector<1x16x384xf32>
    %156 = vector.shape_cast %155 : vector<1x16x384xf32> to vector<16x384xf32>
    %157 = vector.extract_strided_slice %156 {offsets = [0, 0], sizes = [16, 128], strides = [1, 1]} : vector<16x384xf32> to vector<16x128xf32>
    %158 = vector.extract_strided_slice %153 {offsets = [0, 0], sizes = [16, 128], strides = [1, 1]} : vector<16x384xf32> to vector<16x128xf32>
    %159 = arith.addf %157, %158 : vector<16x128xf32>
    %160 = arith.negf %159 : vector<16x128xf32>
    %161 = math.exp %160 : vector<16x128xf32>
    %cst_34 = arith.constant 1.000000e+00 : f32
    %162 = vector.broadcast %cst_34 : f32 to vector<16x128xf32>
    %163 = arith.addf %162, %161 : vector<16x128xf32>
    %164 = arith.divf %162, %163 : vector<16x128xf32>
    %165 = vector.extract_strided_slice %156 {offsets = [0, 128], sizes = [16, 128], strides = [1, 1]} : vector<16x384xf32> to vector<16x128xf32>
    %166 = vector.extract_strided_slice %153 {offsets = [0, 128], sizes = [16, 128], strides = [1, 1]} : vector<16x384xf32> to vector<16x128xf32>
    %167 = arith.addf %165, %166 : vector<16x128xf32>
    %168 = arith.negf %167 : vector<16x128xf32>
    %169 = math.exp %168 : vector<16x128xf32>
    %cst_35 = arith.constant 1.000000e+00 : f32
    %170 = vector.broadcast %cst_35 : f32 to vector<16x128xf32>
    %171 = arith.addf %170, %169 : vector<16x128xf32>
    %172 = arith.divf %170, %171 : vector<16x128xf32>
    %173 = vector.extract_strided_slice %156 {offsets = [0, 256], sizes = [16, 128], strides = [1, 1]} : vector<16x384xf32> to vector<16x128xf32>
    %174 = vector.extract_strided_slice %153 {offsets = [0, 256], sizes = [16, 128], strides = [1, 1]} : vector<16x384xf32> to vector<16x128xf32>
    %175 = arith.addf %174, %6 : vector<16x128xf32>
    %176 = arith.mulf %164, %175 : vector<16x128xf32>
    %177 = arith.addf %173, %176 : vector<16x128xf32>
    %178 = math.tanh %177 : vector<16x128xf32>
    %179 = arith.subf %152, %178 : vector<16x128xf32>
    %180 = arith.mulf %172, %179 : vector<16x128xf32>
    %181 = arith.addf %178, %180 : vector<16x128xf32>
    %c6_i32 = arith.constant 6 : i32
    %cst_36 = arith.constant dense<0.000000e+00> : vector<16x384xf32>
    %182 = tpu.matmul %181, %3, %cst_36 {dimension_numbers = #tpu.dot_dimension_numbers<[1], [0], [0], [1], [0, 0, 1, 1], [], []>} : vector<16x128xf32>, vector<128x384xf32>, vector<16x384xf32> -> vector<16x384xf32>
    %183 = arith.index_cast %c6_i32 : i32 to index
    %c0_37 = arith.constant 0 : index
    %c0_38 = arith.constant 0 : index
    %184 = vector.load %arg2[%183, %c0_37, %c0_38] : memref<8x16x384xf32, #tpu.memory_space<vmem>>, vector<1x16x384xf32>
    %185 = vector.shape_cast %184 : vector<1x16x384xf32> to vector<16x384xf32>
    %186 = vector.extract_strided_slice %185 {offsets = [0, 0], sizes = [16, 128], strides = [1, 1]} : vector<16x384xf32> to vector<16x128xf32>
    %187 = vector.extract_strided_slice %182 {offsets = [0, 0], sizes = [16, 128], strides = [1, 1]} : vector<16x384xf32> to vector<16x128xf32>
    %188 = arith.addf %186, %187 : vector<16x128xf32>
    %189 = arith.negf %188 : vector<16x128xf32>
    %190 = math.exp %189 : vector<16x128xf32>
    %cst_39 = arith.constant 1.000000e+00 : f32
    %191 = vector.broadcast %cst_39 : f32 to vector<16x128xf32>
    %192 = arith.addf %191, %190 : vector<16x128xf32>
    %193 = arith.divf %191, %192 : vector<16x128xf32>
    %194 = vector.extract_strided_slice %185 {offsets = [0, 128], sizes = [16, 128], strides = [1, 1]} : vector<16x384xf32> to vector<16x128xf32>
    %195 = vector.extract_strided_slice %182 {offsets = [0, 128], sizes = [16, 128], strides = [1, 1]} : vector<16x384xf32> to vector<16x128xf32>
    %196 = arith.addf %194, %195 : vector<16x128xf32>
    %197 = arith.negf %196 : vector<16x128xf32>
    %198 = math.exp %197 : vector<16x128xf32>
    %cst_40 = arith.constant 1.000000e+00 : f32
    %199 = vector.broadcast %cst_40 : f32 to vector<16x128xf32>
    %200 = arith.addf %199, %198 : vector<16x128xf32>
    %201 = arith.divf %199, %200 : vector<16x128xf32>
    %202 = vector.extract_strided_slice %185 {offsets = [0, 256], sizes = [16, 128], strides = [1, 1]} : vector<16x384xf32> to vector<16x128xf32>
    %203 = vector.extract_strided_slice %182 {offsets = [0, 256], sizes = [16, 128], strides = [1, 1]} : vector<16x384xf32> to vector<16x128xf32>
    %204 = arith.addf %203, %6 : vector<16x128xf32>
    %205 = arith.mulf %193, %204 : vector<16x128xf32>
    %206 = arith.addf %202, %205 : vector<16x128xf32>
    %207 = math.tanh %206 : vector<16x128xf32>
    %208 = arith.subf %181, %207 : vector<16x128xf32>
    %209 = arith.mulf %201, %208 : vector<16x128xf32>
    %210 = arith.addf %207, %209 : vector<16x128xf32>
    %c7_i32 = arith.constant 7 : i32
    %cst_41 = arith.constant dense<0.000000e+00> : vector<16x384xf32>
    %211 = tpu.matmul %210, %3, %cst_41 {dimension_numbers = #tpu.dot_dimension_numbers<[1], [0], [0], [1], [0, 0, 1, 1], [], []>} : vector<16x128xf32>, vector<128x384xf32>, vector<16x384xf32> -> vector<16x384xf32>
    %212 = arith.index_cast %c7_i32 : i32 to index
    %c0_42 = arith.constant 0 : index
    %c0_43 = arith.constant 0 : index
    %213 = vector.load %arg2[%212, %c0_42, %c0_43] : memref<8x16x384xf32, #tpu.memory_space<vmem>>, vector<1x16x384xf32>
    %214 = vector.shape_cast %213 : vector<1x16x384xf32> to vector<16x384xf32>
    %215 = vector.extract_strided_slice %214 {offsets = [0, 0], sizes = [16, 128], strides = [1, 1]} : vector<16x384xf32> to vector<16x128xf32>
    %216 = vector.extract_strided_slice %211 {offsets = [0, 0], sizes = [16, 128], strides = [1, 1]} : vector<16x384xf32> to vector<16x128xf32>
    %217 = arith.addf %215, %216 : vector<16x128xf32>
    %218 = arith.negf %217 : vector<16x128xf32>
    %219 = math.exp %218 : vector<16x128xf32>
    %cst_44 = arith.constant 1.000000e+00 : f32
    %220 = vector.broadcast %cst_44 : f32 to vector<16x128xf32>
    %221 = arith.addf %220, %219 : vector<16x128xf32>
    %222 = arith.divf %220, %221 : vector<16x128xf32>
    %223 = vector.extract_strided_slice %214 {offsets = [0, 128], sizes = [16, 128], strides = [1, 1]} : vector<16x384xf32> to vector<16x128xf32>
    %224 = vector.extract_strided_slice %211 {offsets = [0, 128], sizes = [16, 128], strides = [1, 1]} : vector<16x384xf32> to vector<16x128xf32>
    %225 = arith.addf %223, %224 : vector<16x128xf32>
    %226 = arith.negf %225 : vector<16x128xf32>
    %227 = math.exp %226 : vector<16x128xf32>
    %cst_45 = arith.constant 1.000000e+00 : f32
    %228 = vector.broadcast %cst_45 : f32 to vector<16x128xf32>
    %229 = arith.addf %228, %227 : vector<16x128xf32>
    %230 = arith.divf %228, %229 : vector<16x128xf32>
    %231 = vector.extract_strided_slice %214 {offsets = [0, 256], sizes = [16, 128], strides = [1, 1]} : vector<16x384xf32> to vector<16x128xf32>
    %232 = vector.extract_strided_slice %211 {offsets = [0, 256], sizes = [16, 128], strides = [1, 1]} : vector<16x384xf32> to vector<16x128xf32>
    %233 = arith.addf %232, %6 : vector<16x128xf32>
    %234 = arith.mulf %222, %233 : vector<16x128xf32>
    %235 = arith.addf %231, %234 : vector<16x128xf32>
    %236 = math.tanh %235 : vector<16x128xf32>
    %237 = arith.subf %210, %236 : vector<16x128xf32>
    %238 = arith.mulf %230, %237 : vector<16x128xf32>
    %239 = arith.addf %236, %238 : vector<16x128xf32>
    %c8_i32 = arith.constant 8 : i32
    %c0_46 = arith.constant 0 : index
    %c0_47 = arith.constant 0 : index
    %240 = vector.load %arg6[%c0_46, %c0_47] : memref<16x128xf32, #tpu.memory_space<vmem>>, vector<16x128xf32>
    tpu.vector_store %arg6[%c0_46, %c0_47], %239 {strides = array<i32>} : memref<16x128xf32, #tpu.memory_space<vmem>>, vector<16x128xf32>,
    %c0_i32_48 = arith.constant 0 : i32
    %241 = arith.cmpi eq, %arg1, %c0_i32_48 : i32
    %242 = arith.extui %241 : i1 to i32
    %c0_i32_49 = arith.constant 0 : i32
    %243 = arith.cmpi ne, %242, %c0_i32_49 : i32
    scf.if %243 {
      %c0_50 = arith.constant 0 : index
      %c0_51 = arith.constant 0 : index
      %244 = vector.load %arg5[%c0_50, %c0_51] : memref<16x128xf32, #tpu.memory_space<vmem>>, vector<16x128xf32>
      tpu.vector_store %arg5[%c0_50, %c0_51], %239 {strides = array<i32>} : memref<16x128xf32, #tpu.memory_space<vmem>>, vector<16x128xf32>,
    } else {
    }
    return
  }
  func.func @transform_0(%arg0: i32, %arg1: i32) -> (i32, i32, i32) {
    %c0_i32 = arith.constant 0 : i32
    %c0_i32_0 = arith.constant 0 : i32
    return %arg1, %arg0, %c0_i32 : i32, i32, i32
  }
  func.func @transform_1(%arg0: i32, %arg1: i32) -> (i32, i32) {
    %c0_i32 = arith.constant 0 : i32
    %c0_i32_0 = arith.constant 0 : i32
    %c0_i32_1 = arith.constant 0 : i32
    return %c0_i32, %c0_i32_0 : i32, i32
  }
  func.func @transform_2(%arg0: i32, %arg1: i32) -> (i32, i32) {
    %c0_i32 = arith.constant 0 : i32
    %c0_i32_0 = arith.constant 0 : i32
    %c0_i32_1 = arith.constant 0 : i32
    return %c0_i32, %c0_i32_0 : i32, i32
  }
  func.func @transform_3(%arg0: i32, %arg1: i32) -> (i32, i32) {
    %c0_i32 = arith.constant 0 : i32
    %c0_i32_0 = arith.constant 0 : i32
    return %arg0, %c0_i32 : i32, i32
  }
}

</mosaic_0001>

<llo_original>
// kernel: tpu_custom_call.1
$region0: #{tpu_custom_call.1}
  #allocation0 [shape = 'u32[]', space=smem, size = 0x4, offset = 0x4, fixed_abs, tag = 'smem constant byte address 0x4 - core index']
  #allocation1 [shape = 'u32[144,128]{1,0:T(1,128)}', space=vmem, size = 0x12000, scoped, tag = 'internal scratch']
  #allocation2 [shape = 'f32[16,128]{1,0:T(8,128)}', space=vmem, size = 0x2000, scoped, tag = 'scratch operand']
  %s0 = inlined_call_operand.hbm [shape: f32[8,16,384], index: 0, kind: input, shape index: {}]
  %s1 = inlined_call_operand.hbm [shape: f32[128,384], index: 1, kind: input, shape index: {}]
  %s2 = inlined_call_operand.vmem [shape: f32[1,128], index: 2, kind: input, shape index: {}]
  %s3 = inlined_call_operand.hbm [shape: f32[16,128], index: 3, kind: output, shape index: {}]
  %s4 = sld [smem:[#allocation0]]
  $region38: #{tpu_custom_call.1} parent=0
    _
  %s6 = ssub.s32 1, %s4
  %s7 = scalar_select 0, %s6, %s4
  $region1: #{tpu_custom_call.1} parent=0
    #allocation3 [shape = 'u8[196608]{0}', space=vmem, size = 0x30000, scoped, tag = 'input window, operand 0, single buffered']
    #allocation4 [shape = 's32[1]{0}', space=sflag, size = 0x4, scoped, tag = 'scoped memory for tpu_custom_call.1']
    #allocation5 [shape = 's32[1]{0}', space=sflag, size = 0x4, scoped, tag = 'scoped memory for tpu_custom_call.1']
    #allocation6 [shape = 'u8[196608]{0}', space=vmem, size = 0x30000, scoped, tag = 'input window, operand 1, single buffered']
    #allocation7 [shape = 's32[1]{0}', space=sflag, size = 0x4, scoped, tag = 'scoped memory for tpu_custom_call.1']
    #allocation8 [shape = 'u8[8192]{0}', space=vmem, size = 0x2000, scoped, tag = 'output window, operand 0, single buffered']
    %8 = vsyncpa [#allocation4], 0
    %9 = vsyncpa [#allocation7], 0
    %10 = vsyncpa [#allocation5], 0
    // Predicated region
    $region2: #{tpu_custom_call.1} parent=1 // pred_check
      _
    $region3: #{tpu_custom_call.1} parent=1 // pred_check_branch
      %12 = sbr.rel (0) target = $region5
    $region4: #{tpu_custom_call.1} parent=1 // pred_region
      %s14 = ssub.s32 6144, 6144
      %15 = vsyncadd [#allocation4], %s14
      %s16 = sshll.u32 [#allocation3], 4
      %s17 = int_to_ptr.vmem [resolvable:$true] %s16
      %22 = dma.hbm_to_vmem [thread:$0]  %s0, 6144, %s17, [#allocation4], 384, 384, 24
    $region5: #{tpu_custom_call.1} parent=1 // pred_fallthru
      _
    // Predicated region
    $region6: #{tpu_custom_call.1} parent=1 // pred_check
      _
    $region7: #{tpu_custom_call.1} parent=1 // pred_check_branch
      %24 = sbr.rel (0) target = $region9
    $region8: #{tpu_custom_call.1} parent=1 // pred_region
      %s26 = ssub.s32 6144, 6144
      %27 = vsyncadd [#allocation7], %s26
      %s28 = sshll.u32 [#allocation6], 4
      %s29 = int_to_ptr.vmem [resolvable:$true] %s28
      %34 = dma.hbm_to_vmem [thread:$0]  %s1, 6144, %s29, [#allocation7], 384, 384, 24
    $region9: #{tpu_custom_call.1} parent=1 // pred_fallthru
      _
    // Predicated region
    $region10: #{tpu_custom_call.1} parent=1 // pred_check
      _
    $region11: #{tpu_custom_call.1} parent=1 // pred_check_branch
      %36 = sbr.rel (0) target = $region13
    $region12: #{tpu_custom_call.1} parent=1 // pred_region
      _
    $region13: #{tpu_custom_call.1} parent=1 // pred_fallthru
      _
    // Predicated region
    $region14: #{tpu_custom_call.1} parent=1 // pred_check
      _
    $region15: #{tpu_custom_call.1} parent=1 // pred_check_branch
      %38 = sbr.rel (0) target = $region17
    $region16: #{tpu_custom_call.1} parent=1 // pred_region
      %39 = dma.done [#allocation4], 6144
    $region17: #{tpu_custom_call.1} parent=1 // pred_fallthru
      _
    // Predicated region
    $region18: #{tpu_custom_call.1} parent=1 // pred_check
      _
    $region19: #{tpu_custom_call.1} parent=1 // pred_check_branch
      %41 = sbr.rel (0) target = $region21
    $region20: #{tpu_custom_call.1} parent=1 // pred_region
      %42 = dma.done [#allocation7], 6144
    $region21: #{tpu_custom_call.1} parent=1 // pred_fallthru
      _
    %p43 = scmp.eq.s32.totalorder 0, 0
    // Predicated region
    $region22: #{tpu_custom_call.1} parent=1 // pred_check
      %p44 = pneg %p43
    $region23: #{tpu_custom_call.1} parent=1 // pred_check_branch
      %46 = sbr.rel (%p44) target = $region25
    $region24: #{tpu_custom_call.1} parent=1 // pred_region
      %47 = vst [vmem:[#allocation2] sm:$0xff] 0.0
      %48 = vst [vmem:[#allocation2 + $0x8] sm:$0xff] 0.0
    $region25: #{tpu_custom_call.1} parent=1 // pred_fallthru
      _
    %v49 = vld [vmem:[#allocation6] sm:$0xff]
    %v50 = vld [vmem:[#allocation6 + $0x8] sm:$0xff]
    %v51 = vld [vmem:[#allocation6 + $0x10] sm:$0xff]
    %v52 = vld [vmem:[#allocation6 + $0x18] sm:$0xff]
    %v53 = vld [vmem:[#allocation6 + $0x20] sm:$0xff]
    %v54 = vld [vmem:[#allocation6 + $0x28] sm:$0xff]
    %v55 = vld [vmem:[#allocation6 + $0x30] sm:$0xff]
    %v56 = vld [vmem:[#allocation6 + $0x38] sm:$0xff]
    %v57 = vld [vmem:[#allocation6 + $0x40] sm:$0xff]
    %v58 = vld [vmem:[#allocation6 + $0x48] sm:$0xff]
    %v59 = vld [vmem:[#allocation6 + $0x50] sm:$0xff]
    %v60 = vld [vmem:[#allocation6 + $0x58] sm:$0xff]
    %v61 = vld [vmem:[#allocation6 + $0x60] sm:$0xff]
    %v62 = vld [vmem:[#allocation6 + $0x68] sm:$0xff]
    %v63 = vld [vmem:[#allocation6 + $0x70] sm:$0xff]
    %v64 = vld [vmem:[#allocation6 + $0x78] sm:$0xff]
    %v65 = vld [vmem:[#allocation6 + $0x80] sm:$0xff]
    %v66 = vld [vmem:[#allocation6 + $0x88] sm:$0xff]
    %v67 = vld [vmem:[#allocation6 + $0x90] sm:$0xff]
    %v68 = vld [vmem:[#allocation6 + $0x98] sm:$0xff]
    %v69 = vld [vmem:[#allocation6 + $0xa0] sm:$0xff]
    %v70 = vld [vmem:[#allocation6 + $0xa8] sm:$0xff]
    %v71 = vld [vmem:[#allocation6 + $0xb0] sm:$0xff]
    %v72 = vld [vmem:[#allocation6 + $0xb8] sm:$0xff]
    %v73 = vld [vmem:[#allocation6 + $0xc0] sm:$0xff]
    %v74 = vld [vmem:[#allocation6 + $0xc8] sm:$0xff]
    %v75 = vld [vmem:[#allocation6 + $0xd0] sm:$0xff]
    %v76 = vld [vmem:[#allocation6 + $0xd8] sm:$0xff]
    %v77 = vld [vmem:[#allocation6 + $0xe0] sm:$0xff]
    %v78 = vld [vmem:[#allocation6 + $0xe8] sm:$0xff]
    %v79 = vld [vmem:[#allocation6 + $0xf0] sm:$0xff]
    %v80 = vld [vmem:[#allocation6 + $0xf8] sm:$0xff]
    %v81 = vld [vmem:[#allocation6 + $0x100] sm:$0xff]
    %v82 = vld [vmem:[#allocation6 + $0x108] sm:$0xff]
    %v83 = vld [vmem:[#allocation6 + $0x110] sm:$0xff]
    %v84 = vld [vmem:[#allocation6 + $0x118] sm:$0xff]
    %v85 = vld [vmem:[#allocation6 + $0x120] sm:$0xff]
    %v86 = vld [vmem:[#allocation6 + $0x128] sm:$0xff]
    %v87 = vld [vmem:[#allocation6 + $0x130] sm:$0xff]
    %v88 = vld [vmem:[#allocation6 + $0x138] sm:$0xff]
    %v89 = vld [vmem:[#allocation6 + $0x140] sm:$0xff]
    %v90 = vld [vmem:[#allocation6 + $0x148] sm:$0xff]
    %v91 = vld [vmem:[#allocation6 + $0x150] sm:$0xff]
    %v92 = vld [vmem:[#allocation6 + $0x158] sm:$0xff]
    %v93 = vld [vmem:[#allocation6 + $0x160] sm:$0xff]
    %v94 = vld [vmem:[#allocation6 + $0x168] sm:$0xff]
    %v95 = vld [vmem:[#allocation6 + $0x170] sm:$0xff]
    %v96 = vld [vmem:[#allocation6 + $0x178] sm:$0xff]
    %v97 = vld [vmem:[%s2] sm:$0x1]
    %v99 = vlaneseq
    %v100 = vshrl.u32 %v99, 7
    %v101 = vsub.s32 0, %v100
    %v102 = vrot.slane %v97, %v101
    %v104 = vld [vmem:[#allocation2] sm:$0xff]
    %v105 = vld [vmem:[#allocation2 + $0x8] sm:$0xff]
    %106 = vmatprep.subr.mxu0 %v50
    %107 = vmatpush1.msra.mxu0 %v49
    %108 = vmatprep.subr.mxu0 %v53
    %109 = vmatpush1.msra.mxu0 %v52
    %110 = vmatprep.subr.mxu0 %v56
    %111 = vmatpush1.msra.mxu0 %v55
    %112 = vmatprep.subr.mxu0 %v59
    %113 = vmatpush1.msra.mxu0 %v58
    %114 = vmatprep.subr.mxu0 %v62
    %115 = vmatpush1.msra.mxu0 %v61
    %116 = vmatprep.subr.mxu0 %v65
    %117 = vmatpush1.msra.mxu0 %v64
    %118 = vmatprep.subr.mxu0 %v68
    %119 = vmatpush1.msra.mxu0 %v67
    %120 = vmatprep.subr.mxu0 %v71
    %121 = vmatpush1.msra.mxu0 %v70
    %122 = vmatprep.subr.mxu0 %v74
    %123 = vmatpush1.msra.mxu0 %v73
    %124 = vmatprep.subr.mxu0 %v77
    %125 = vmatpush1.msra.mxu0 %v76
    %126 = vmatprep.subr.mxu0 %v80
    %127 = vmatpush1.msra.mxu0 %v79
    %128 = vmatprep.subr.mxu0 %v83
    %129 = vmatpush1.msra.mxu0 %v82
    %130 = vmatprep.subr.mxu0 %v86
    %131 = vmatpush1.msra.mxu0 %v85
    %132 = vmatprep.subr.mxu0 %v89
    %133 = vmatpush1.msra.mxu0 %v88
    %134 = vmatprep.subr.mxu0 %v92
    %135 = vmatpush1.msra.mxu0 %v91
    %136 = vmatprep.subr.mxu0 %v95
    %137 = vmatpush1.msra.mxu0 %v94
    %138 = vmatprep.subr.mxu0 0.0
    %139 = vmatpush1.msra.mxu0 0.0
    %140 = vmatprep.subr.mxu0 0.0
    %141 = vmatpush1.msra.mxu0 0.0
    %142 = vmatprep.subr.mxu0 0.0
    %143 = vmatpush1.msra.mxu0 0.0
    %144 = vmatprep.subr.mxu0 0.0
    %145 = vmatpush1.msra.mxu0 0.0
    %146 = vmatprep.subr.mxu0 0.0
    %147 = vmatpush1.msra.mxu0 0.0
    %148 = vmatprep.subr.mxu0 0.0
    %149 = vmatpush1.msra.mxu0 0.0
    %150 = vmatprep.subr.mxu0 0.0
    %151 = vmatpush1.msra.mxu0 0.0
    %152 = vmatprep.subr.mxu0 0.0
    %153 = vmatpush1.msra.mxu0 0.0
    %154 = vmatprep.subr.mxu0 0.0
    %155 = vmatpush1.msra.mxu0 0.0
    %156 = vmatprep.subr.mxu0 0.0
    %157 = vmatpush1.msra.mxu0 0.0
    %158 = vmatprep.subr.mxu0 0.0
    %159 = vmatpush1.msra.mxu0 0.0
    %160 = vmatprep.subr.mxu0 0.0
    %161 = vmatpush1.msra.mxu0 0.0
    %162 = vmatprep.subr.mxu0 0.0
    %163 = vmatpush1.msra.mxu0 0.0
    %164 = vmatprep.subr.mxu0 0.0
    %165 = vmatpush1.msra.mxu0 0.0
    %166 = vmatprep.subr.mxu0 0.0
    %167 = vmatpush1.msra.mxu0 0.0
    %168 = vmatprep.subr.mxu0 0.0
    %169 = vmatpush1.msra.mxu0 0.0
    %170 = vmatprep.mubr.f32.mxu0 0.0
    %171 = vmatmul.mubr.f32.gmra.mrb[0].mxu0 %v104
    %v172 = vpop.f32.mrb[0].mxu0
    %v173 = vadd.f32 0.0, %v172
    %v174 = vpop.f32.mrb[0].mxu0
    %v175 = vadd.f32 0.0, %v174
    %176 = vmatprep.mubr.f32.mxu0 0.0
    %177 = vmatmul.mubr.f32.gmra.mrb[0].mxu0 %v105
    %v178 = vpop.f32.mrb[0].mxu0
    %v179 = vadd.f32 0.0, %v178
    %v180 = vpop.f32.mrb[0].mxu0
    %v181 = vadd.f32 0.0, %v180
    %182 = vdwg.mxu0
    %183 = vmatprep.subr.mxu0 0.0
    %184 = vmatpush1.msra.mxu0 %v51
    %185 = vmatprep.subr.mxu0 0.0
    %186 = vmatpush1.msra.mxu0 %v54
    %187 = vmatprep.subr.mxu0 0.0
    %188 = vmatpush1.msra.mxu0 %v57
    %189 = vmatprep.subr.mxu0 0.0
    %190 = vmatpush1.msra.mxu0 %v60
    %191 = vmatprep.subr.mxu0 0.0
    %192 = vmatpush1.msra.mxu0 %v63
    %193 = vmatprep.subr.mxu0 0.0
    %194 = vmatpush1.msra.mxu0 %v66
    %195 = vmatprep.subr.mxu0 0.0
    %196 = vmatpush1.msra.mxu0 %v69
    %197 = vmatprep.subr.mxu0 0.0
    %198 = vmatpush1.msra.mxu0 %v72
    %199 = vmatprep.subr.mxu0 0.0
    %200 = vmatpush1.msra.mxu0 %v75
    %201 = vmatprep.subr.mxu0 0.0
    %202 = vmatpush1.msra.mxu0 %v78
    %203 = vmatprep.subr.mxu0 0.0
    %204 = vmatpush1.msra.mxu0 %v81
    %205 = vmatprep.subr.mxu0 0.0
    %206 = vmatpush1.msra.mxu0 %v84
    %207 = vmatprep.subr.mxu0 0.0
    %208 = vmatpush1.msra.mxu0 %v87
    %209 = vmatprep.subr.mxu0 0.0
    %210 = vmatpush1.msra.mxu0 %v90
    %211 = vmatprep.subr.mxu0 0.0
    %212 = vmatpush1.msra.mxu0 %v93
    %213 = vmatprep.subr.mxu0 0.0
    %214 = vmatpush1.msra.mxu0 %v96
    %215 = vmatprep.subr.mxu0 0.0
    %216 = vmatpush1.msra.mxu0 0.0
    %217 = vmatprep.subr.mxu0 0.0
    %218 = vmatpush1.msra.mxu0 0.0
    %219 = vmatprep.subr.mxu0 0.0
    %220 = vmatpush1.msra.mxu0 0.0
    %221 = vmatprep.subr.mxu0 0.0
    %222 = vmatpush1.msra.mxu0 0.0
    %223 = vmatprep.subr.mxu0 0.0
    %224 = vmatpush1.msra.mxu0 0.0
    %225 = vmatprep.subr.mxu0 0.0
    %226 = vmatpush1.msra.mxu0 0.0
    %227 = vmatprep.subr.mxu0 0.0
    %228 = vmatpush1.msra.mxu0 0.0
    %229 = vmatprep.subr.mxu0 0.0
    %230 = vmatpush1.msra.mxu0 0.0
    %231 = vmatprep.subr.mxu0 0.0
    %232 = vmatpush1.msra.mxu0 0.0
    %233 = vmatprep.subr.mxu0 0.0
    %234 = vmatpush1.msra.mxu0 0.0
    %235 = vmatprep.subr.mxu0 0.0
    %236 = vmatpush1.msra.mxu0 0.0
    %237 = vmatprep.subr.mxu0 0.0
    %238 = vmatpush1.msra.mxu0 0.0
    %239 = vmatprep.subr.mxu0 0.0
    %240 = vmatpush1.msra.mxu0 0.0
    %241 = vmatprep.subr.mxu0 0.0
    %242 = vmatpush1.msra.mxu0 0.0
    %243 = vmatprep.subr.mxu0 0.0
    %244 = vmatpush1.msra.mxu0 0.0
    %245 = vmatprep.subr.mxu0 0.0
    %246 = vmatpush1.msra.mxu0 0.0
    %247 = vmatprep.mubr.f32.mxu0 0.0
    %248 = vmatmul.mubr.f32.gmra.mrb[0].mxu0 %v104
    %v249 = vpop.f32.mrb[0].mxu0
    %v250 = vadd.f32 0.0, %v249
    %v251 = vpop.f32.mrb[0].mxu0
    %252 = vmatprep.mubr.f32.mxu0 0.0
    %253 = vmatmul.mubr.f32.gmra.mrb[0].mxu0 %v105
    %v254 = vpop.f32.mrb[0].mxu0
    %v255 = vadd.f32 0.0, %v254
    %v256 = vpop.f32.mrb[0].mxu0
    %257 = vdwg.mxu0
    %v258 = vld [vmem:[#allocation3] sm:$0xff]
    %v259 = vld [vmem:[#allocation3 + $0x8] sm:$0xff]
    %v260 = vld [vmem:[#allocation3 + $0x10] sm:$0xff]
    %v261 = vld [vmem:[#allocation3 + $0x18] sm:$0xff]
    %v262 = vld [vmem:[#allocation3 + $0x20] sm:$0xff]
    %v263 = vld [vmem:[#allocation3 + $0x28] sm:$0xff]
    %v264 = vadd.f32 %v258, %v173
    %v265 = vadd.f32 %v261, %v179
    %v266 = vxor.u32 %v264, 2147483648
    %v267 = vxor.u32 %v265, 2147483648
    %v268 = vmul.f32 %v266, 1.442695
    %v269 = vpow.pop %v268
    %v270 = vmul.f32 %v267, 1.442695
    %v271 = vpow.pop %v270
    %v272 = vadd.f32 %v269, 1.0
    %v273 = vadd.f32 %v271, 1.0
    %v274 = vrcp.pop %v272
    %v275 = vmul.f32 1.0, %v274
    %v276 = vrcp.pop %v273
    %v277 = vmul.f32 1.0, %v276
    %v278 = vadd.f32 %v259, %v175
    %v279 = vadd.f32 %v262, %v181
    %v280 = vxor.u32 %v278, 2147483648
    %v281 = vxor.u32 %v279, 2147483648
    %v282 = vmul.f32 %v280, 1.442695
    %v283 = vpow.pop %v282
    %v284 = vmul.f32 %v281, 1.442695
    %v285 = vpow.pop %v284
    %v286 = vadd.f32 %v283, 1.0
    %v287 = vadd.f32 %v285, 1.0
    %v288 = vrcp.pop %v286
    %v289 = vmul.f32 1.0, %v288
    %v290 = vrcp.pop %v287
    %v291 = vmul.f32 1.0, %v290
    %v292 = vadd.f32 %v250, %v102
    %v293 = vadd.f32 %v255, %v102
    %v294 = vmul.f32 %v275, %v292
    %v295 = vmul.f32 %v277, %v293
    %v296 = vadd.f32 %v260, %v294
    %v297 = vadd.f32 %v263, %v295
    %v298 = vtanh.pop %v296
    %v299 = vtanh.pop %v297
    %v300 = vsub.f32 %v104, %v298
    %v301 = vsub.f32 %v105, %v299
    %v302 = vmul.f32 %v289, %v300
    %v303 = vmul.f32 %v291, %v301
    %v304 = vadd.f32 %v298, %v302
    %v305 = vadd.f32 %v299, %v303
    %306 = vmatprep.subr.mxu0 %v50
    %307 = vmatpush1.msra.mxu0 %v49
    %308 = vmatprep.subr.mxu0 %v53
    %309 = vmatpush1.msra.mxu0 %v52
    %310 = vmatprep.subr.mxu0 %v56
    %311 = vmatpush1.msra.mxu0 %v55
    %312 = vmatprep.subr.mxu0 %v59
    %313 = vmatpush1.msra.mxu0 %v58
    %314 = vmatprep.subr.mxu0 %v62
    %315 = vmatpush1.msra.mxu0 %v61
    %316 = vmatprep.subr.mxu0 %v65
    %317 = vmatpush1.msra.mxu0 %v64
    %318 = vmatprep.subr.mxu0 %v68
    %319 = vmatpush1.msra.mxu0 %v67
    %320 = vmatprep.subr.mxu0 %v71
    %321 = vmatpush1.msra.mxu0 %v70
    %322 = vmatprep.subr.mxu0 %v74
    %323 = vmatpush1.msra.mxu0 %v73
    %324 = vmatprep.subr.mxu0 %v77
    %325 = vmatpush1.msra.mxu0 %v76
    %326 = vmatprep.subr.mxu0 %v80
    %327 = vmatpush1.msra.mxu0 %v79
    %328 = vmatprep.subr.mxu0 %v83
    %329 = vmatpush1.msra.mxu0 %v82
    %330 = vmatprep.subr.mxu0 %v86
    %331 = vmatpush1.msra.mxu0 %v85
    %332 = vmatprep.subr.mxu0 %v89
    %333 = vmatpush1.msra.mxu0 %v88
    %334 = vmatprep.subr.mxu0 %v92
    %335 = vmatpush1.msra.mxu0 %v91
    %336 = vmatprep.subr.mxu0 %v95
    %337 = vmatpush1.msra.mxu0 %v94
    %338 = vmatprep.subr.mxu0 0.0
    %339 = vmatpush1.msra.mxu0 0.0
    %340 = vmatprep.subr.mxu0 0.0
    %341 = vmatpush1.msra.mxu0 0.0
    %342 = vmatprep.subr.mxu0 0.0
    %343 = vmatpush1.msra.mxu0 0.0
    %344 = vmatprep.subr.mxu0 0.0
    %345 = vmatpush1.msra.mxu0 0.0
    %346 = vmatprep.subr.mxu0 0.0
    %347 = vmatpush1.msra.mxu0 0.0
    %348 = vmatprep.subr.mxu0 0.0
    %349 = vmatpush1.msra.mxu0 0.0
    %350 = vmatprep.subr.mxu0 0.0
    %351 = vmatpush1.msra.mxu0 0.0
    %352 = vmatprep.subr.mxu0 0.0
    %353 = vmatpush1.msra.mxu0 0.0
    %354 = vmatprep.subr.mxu0 0.0
    %355 = vmatpush1.msra.mxu0 0.0
    %356 = vmatprep.subr.mxu0 0.0
    %357 = vmatpush1.msra.mxu0 0.0
    %358 = vmatprep.subr.mxu0 0.0
    %359 = vmatpush1.msra.mxu0 0.0
    %360 = vmatprep.subr.mxu0 0.0
    %361 = vmatpush1.msra.mxu0 0.0
    %362 = vmatprep.subr.mxu0 0.0
    %363 = vmatpush1.msra.mxu0 0.0
    %364 = vmatprep.subr.mxu0 0.0
    %365 = vmatpush1.msra.mxu0 0.0
    %366 = vmatprep.subr.mxu0 0.0
    %367 = vmatpush1.msra.mxu0 0.0
    %368 = vmatprep.subr.mxu0 0.0
    %369 = vmatpush1.msra.mxu0 0.0
    %370 = vmatprep.mubr.f32.mxu0 0.0
    %371 = vmatmul.mubr.f32.gmra.mrb[0].mxu0 %v304
    %v372 = vpop.f32.mrb[0].mxu0
    %v373 = vadd.f32 0.0, %v372
    %v374 = vpop.f32.mrb[0].mxu0
    %v375 = vadd.f32 0.0, %v374
    %376 = vmatprep.mubr.f32.mxu0 0.0
    %377 = vmatmul.mubr.f32.gmra.mrb[0].mxu0 %v305
    %v378 = vpop.f32.mrb[0].mxu0
    %v379 = vadd.f32 0.0, %v378
    %v380 = vpop.f32.mrb[0].mxu0
    %v381 = vadd.f32 0.0, %v380
    %382 = vdwg.mxu0
    %383 = vmatprep.subr.mxu0 0.0
    %384 = vmatpush1.msra.mxu0 %v51
    %385 = vmatprep.subr.mxu0 0.0
    %386 = vmatpush1.msra.mxu0 %v54
    %387 = vmatprep.subr.mxu0 0.0
    %388 = vmatpush1.msra.mxu0 %v57
    %389 = vmatprep.subr.mxu0 0.0
    %390 = vmatpush1.msra.mxu0 %v60
    %391 = vmatprep.subr.mxu0 0.0
    %392 = vmatpush1.msra.mxu0 %v63
    %393 = vmatprep.subr.mxu0 0.0
    %394 = vmatpush1.msra.mxu0 %v66
    %395 = vmatprep.subr.mxu0 0.0
    %396 = vmatpush1.msra.mxu0 %v69
    %397 = vmatprep.subr.mxu0 0.0
    %398 = vmatpush1.msra.mxu0 %v72
    %399 = vmatprep.subr.mxu0 0.0
    %400 = vmatpush1.msra.mxu0 %v75
    %401 = vmatprep.subr.mxu0 0.0
    %402 = vmatpush1.msra.mxu0 %v78
    %403 = vmatprep.subr.mxu0 0.0
    %404 = vmatpush1.msra.mxu0 %v81
    %405 = vmatprep.subr.mxu0 0.0
    %406 = vmatpush1.msra.mxu0 %v84
    %407 = vmatprep.subr.mxu0 0.0
    %408 = vmatpush1.msra.mxu0 %v87
    %409 = vmatprep.subr.mxu0 0.0
    %410 = vmatpush1.msra.mxu0 %v90
    %411 = vmatprep.subr.mxu0 0.0
    %412 = vmatpush1.msra.mxu0 %v93
    %413 = vmatprep.subr.mxu0 0.0
    %414 = vmatpush1.msra.mxu0 %v96
    %415 = vmatprep.subr.mxu0 0.0
    %416 = vmatpush1.msra.mxu0 0.0
    %417 = vmatprep.subr.mxu0 0.0
    %418 = vmatpush1.msra.mxu0 0.0
    %419 = vmatprep.subr.mxu0 0.0
    %420 = vmatpush1.msra.mxu0 0.0
    %421 = vmatprep.subr.mxu0 0.0
    %422 = vmatpush1.msra.mxu0 0.0
    %423 = vmatprep.subr.mxu0 0.0
    %424 = vmatpush1.msra.mxu0 0.0
    %425 = vmatprep.subr.mxu0 0.0
    %426 = vmatpush1.msra.mxu0 0.0
    %427 = vmatprep.subr.mxu0 0.0
    %428 = vmatpush1.msra.mxu0 0.0
    %429 = vmatprep.subr.mxu0 0.0
    %430 = vmatpush1.msra.mxu0 0.0
    %431 = vmatprep.subr.mxu0 0.0
    %432 = vmatpush1.msra.mxu0 0.0
    %433 = vmatprep.subr.mxu0 0.0
    %434 = vmatpush1.msra.mxu0 0.0
    %435 = vmatprep.subr.mxu0 0.0
    %436 = vmatpush1.msra.mxu0 0.0
    %437 = vmatprep.subr.mxu0 0.0
    %438 = vmatpush1.msra.mxu0 0.0
    %439 = vmatprep.subr.mxu0 0.0
    %440 = vmatpush1.msra.mxu0 0.0
    %441 = vmatprep.subr.mxu0 0.0
    %442 = vmatpush1.msra.mxu0 0.0
    %443 = vmatprep.subr.mxu0 0.0
    %444 = vmatpush1.msra.mxu0 0.0
    %445 = vmatprep.subr.mxu0 0.0
    %446 = vmatpush1.msra.mxu0 0.0
    %447 = vmatprep.mubr.f32.mxu0 0.0
    %448 = vmatmul.mubr.f32.gmra.mrb[0].mxu0 %v304
    %v449 = vpop.f32.mrb[0].mxu0
    %v450 = vadd.f32 0.0, %v449
    %v451 = vpop.f32.mrb[0].mxu0
    %452 = vmatprep.mubr.f32.mxu0 0.0
    %453 = vmatmul.mubr.f32.gmra.mrb[0].mxu0 %v305
    %v454 = vpop.f32.mrb[0].mxu0
    %v455 = vadd.f32 0.0, %v454
    %v456 = vpop.f32.mrb[0].mxu0
    %457 = vdwg.mxu0
    %s458 = scalar_lea.vmem [#allocation3], 48
    %v459 = vld [vmem:[%s458] sm:$0xff]
    %v460 = vld [vmem:[%s458 + $0x8] sm:$0xff]
    %v461 = vld [vmem:[%s458 + $0x10] sm:$0xff]
    %v462 = vld [vmem:[%s458 + $0x18] sm:$0xff]
    %v463 = vld [vmem:[%s458 + $0x20] sm:$0xff]
    %v464 = vld [vmem:[%s458 + $0x28] sm:$0xff]
    %v465 = vadd.f32 %v459, %v373
    %v466 = vadd.f32 %v462, %v379
    %v467 = vxor.u32 %v465, 2147483648
    %v468 = vxor.u32 %v466, 2147483648
    %v469 = vmul.f32 %v467, 1.442695
    %v470 = vpow.pop %v469
    %v471 = vmul.f32 %v468, 1.442695
    %v472 = vpow.pop %v471
    %v473 = vadd.f32 %v470, 1.0
    %v474 = vadd.f32 %v472, 1.0
    %v475 = vrcp.pop %v473
    %v476 = vmul.f32 1.0, %v475
    %v477 = vrcp.pop %v474
    %v478 = vmul.f32 1.0, %v477
    %v479 = vadd.f32 %v460, %v375
    %v480 = vadd.f32 %v463, %v381
    %v481 = vxor.u32 %v479, 2147483648
    %v482 = vxor.u32 %v480, 2147483648
    %v483 = vmul.f32 %v481, 1.442695
    %v484 = vpow.pop %v483
    %v485 = vmul.f32 %v482, 1.442695
    %v486 = vpow.pop %v485
    %v487 = vadd.f32 %v484, 1.0
    %v488 = vadd.f32 %v486, 1.0
    %v489 = vrcp.pop %v487
    %v490 = vmul.f32 1.0, %v489
    %v491 = vrcp.pop %v488
    %v492 = vmul.f32 1.0, %v491
    %v493 = vadd.f32 %v450, %v102
    %v494 = vadd.f32 %v455, %v102
    %v495 = vmul.f32 %v476, %v493
    %v496 = vmul.f32 %v478, %v494
    %v497 = vadd.f32 %v461, %v495
    %v498 = vadd.f32 %v464, %v496
    %v499 = vtanh.pop %v497
    %v500 = vtanh.pop %v498
    %v501 = vsub.f32 %v304, %v499
    %v502 = vsub.f32 %v305, %v500
    %v503 = vmul.f32 %v490, %v501
    %v504 = vmul.f32 %v492, %v502
    %v505 = vadd.f32 %v499, %v503
    %v506 = vadd.f32 %v500, %v504
    %507 = vmatprep.subr.mxu0 %v50
    %508 = vmatpush1.msra.mxu0 %v49
    %509 = vmatprep.subr.mxu0 %v53
    %510 = vmatpush1.msra.mxu0 %v52
    %511 = vmatprep.subr.mxu0 %v56
    %512 = vmatpush1.msra.mxu0 %v55
    %513 = vmatprep.subr.mxu0 %v59
    %514 = vmatpush1.msra.mxu0 %v58
    %515 = vmatprep.subr.mxu0 %v62
    %516 = vmatpush1.msra.mxu0 %v61
    %517 = vmatprep.subr.mxu0 %v65
    %518 = vmatpush1.msra.mxu0 %v64
    %519 = vmatprep.subr.mxu0 %v68
    %520 = vmatpush1.msra.mxu0 %v67
    %521 = vmatprep.subr.mxu0 %v71
    %522 = vmatpush1.msra.mxu0 %v70
    %523 = vmatprep.subr.mxu0 %v74
    %524 = vmatpush1.msra.mxu0 %v73
    %525 = vmatprep.subr.mxu0 %v77
    %526 = vmatpush1.msra.mxu0 %v76
    %527 = vmatprep.subr.mxu0 %v80
    %528 = vmatpush1.msra.mxu0 %v79
    %529 = vmatprep.subr.mxu0 %v83
    %530 = vmatpush1.msra.mxu0 %v82
    %531 = vmatprep.subr.mxu0 %v86
    %532 = vmatpush1.msra.mxu0 %v85
    %533 = vmatprep.subr.mxu0 %v89
    %534 = vmatpush1.msra.mxu0 %v88
    %535 = vmatprep.subr.mxu0 %v92
    %536 = vmatpush1.msra.mxu0 %v91
    %537 = vmatprep.subr.mxu0 %v95
    %538 = vmatpush1.msra.mxu0 %v94
    %539 = vmatprep.subr.mxu0 0.0
    %540 = vmatpush1.msra.mxu0 0.0
    %541 = vmatprep.subr.mxu0 0.0
    %542 = vmatpush1.msra.mxu0 0.0
    %543 = vmatprep.subr.mxu0 0.0
    %544 = vmatpush1.msra.mxu0 0.0
    %545 = vmatprep.subr.mxu0 0.0
    %546 = vmatpush1.msra.mxu0 0.0
    %547 = vmatprep.subr.mxu0 0.0
    %548 = vmatpush1.msra.mxu0 0.0
    %549 = vmatprep.subr.mxu0 0.0
    %550 = vmatpush1.msra.mxu0 0.0
    %551 = vmatprep.subr.mxu0 0.0
    %552 = vmatpush1.msra.mxu0 0.0
    %553 = vmatprep.subr.mxu0 0.0
    %554 = vmatpush1.msra.mxu0 0.0
    %555 = vmatprep.subr.mxu0 0.0
    %556 = vmatpush1.msra.mxu0 0.0
    %557 = vmatprep.subr.mxu0 0.0
    %558 = vmatpush1.msra.mxu0 0.0
    %559 = vmatprep.subr.mxu0 0.0
    %560 = vmatpush1.msra.mxu0 0.0
    %561 = vmatprep.subr.mxu0 0.0
    %562 = vmatpush1.msra.mxu0 0.0
    %563 = vmatprep.subr.mxu0 0.0
    %564 = vmatpush1.msra.mxu0 0.0
    %565 = vmatprep.subr.mxu0 0.0
    %566 = vmatpush1.msra.mxu0 0.0
    %567 = vmatprep.subr.mxu0 0.0
    %568 = vmatpush1.msra.mxu0 0.0
    %569 = vmatprep.subr.mxu0 0.0
    %570 = vmatpush1.msra.mxu0 0.0
    %571 = vmatprep.mubr.f32.mxu0 0.0
    %572 = vmatmul.mubr.f32.gmra.mrb[0].mxu0 %v505
    %v573 = vpop.f32.mrb[0].mxu0
    %v574 = vadd.f32 0.0, %v573
    %v575 = vpop.f32.mrb[0].mxu0
    %v576 = vadd.f32 0.0, %v575
    %577 = vmatprep.mubr.f32.mxu0 0.0
    %578 = vmatmul.mubr.f32.gmra.mrb[0].mxu0 %v506
    %v579 = vpop.f32.mrb[0].mxu0
    %v580 = vadd.f32 0.0, %v579
    %v581 = vpop.f32.mrb[0].mxu0
    %v582 = vadd.f32 0.0, %v581
    %583 = vdwg.mxu0
    %584 = vmatprep.subr.mxu0 0.0
    %585 = vmatpush1.msra.mxu0 %v51
    %586 = vmatprep.subr.mxu0 0.0
    %587 = vmatpush1.msra.mxu0 %v54
    %588 = vmatprep.subr.mxu0 0.0
    %589 = vmatpush1.msra.mxu0 %v57
    %590 = vmatprep.subr.mxu0 0.0
    %591 = vmatpush1.msra.mxu0 %v60
    %592 = vmatprep.subr.mxu0 0.0
    %593 = vmatpush1.msra.mxu0 %v63
    %594 = vmatprep.subr.mxu0 0.0
    %595 = vmatpush1.msra.mxu0 %v66
    %596 = vmatprep.subr.mxu0 0.0
    %597 = vmatpush1.msra.mxu0 %v69
    %598 = vmatprep.subr.mxu0 0.0
    %599 = vmatpush1.msra.mxu0 %v72
    %600 = vmatprep.subr.mxu0 0.0
    %601 = vmatpush1.msra.mxu0 %v75
    %602 = vmatprep.subr.mxu0 0.0
    %603 = vmatpush1.msra.mxu0 %v78
    %604 = vmatprep.subr.mxu0 0.0
    %605 = vmatpush1.msra.mxu0 %v81
    %606 = vmatprep.subr.mxu0 0.0
    %607 = vmatpush1.msra.mxu0 %v84
    %608 = vmatprep.subr.mxu0 0.0
    %609 = vmatpush1.msra.mxu0 %v87
    %610 = vmatprep.subr.mxu0 0.0
    %611 = vmatpush1.msra.mxu0 %v90
    %612 = vmatprep.subr.mxu0 0.0
    %613 = vmatpush1.msra.mxu0 %v93
    %614 = vmatprep.subr.mxu0 0.0
    %615 = vmatpush1.msra.mxu0 %v96
    %616 = vmatprep.subr.mxu0 0.0
    %617 = vmatpush1.msra.mxu0 0.0
    %618 = vmatprep.subr.mxu0 0.0
    %619 = vmatpush1.msra.mxu0 0.0
    %620 = vmatprep.subr.mxu0 0.0
    %621 = vmatpush1.msra.mxu0 0.0
    %622 = vmatprep.subr.mxu0 0.0
    %623 = vmatpush1.msra.mxu0 0.0
    %624 = vmatprep.subr.mxu0 0.0
    %625 = vmatpush1.msra.mxu0 0.0
    %626 = vmatprep.subr.mxu0 0.0
    %627 = vmatpush1.msra.mxu0 0.0
    %628 = vmatprep.subr.mxu0 0.0
    %629 = vmatpush1.msra.mxu0 0.0
    %630 = vmatprep.subr.mxu0 0.0
    %631 = vmatpush1.msra.mxu0 0.0
    %632 = vmatprep.subr.mxu0 0.0
    %633 = vmatpush1.msra.mxu0 0.0
    %634 = vmatprep.subr.mxu0 0.0
    %635 = vmatpush1.msra.mxu0 0.0
    %636 = vmatprep.subr.mxu0 0.0
    %637 = vmatpush1.msra.mxu0 0.0
    %638 = vmatprep.subr.mxu0 0.0
    %639 = vmatpush1.msra.mxu0 0.0
    %640 = vmatprep.subr.mxu0 0.0
    %641 = vmatpush1.msra.mxu0 0.0
    %642 = vmatprep.subr.mxu0 0.0
    %643 = vmatpush1.msra.mxu0 0.0
    %644 = vmatprep.subr.mxu0 0.0
    %645 = vmatpush1.msra.mxu0 0.0
    %646 = vmatprep.subr.mxu0 0.0
    %647 = vmatpush1.msra.mxu0 0.0
    %648 = vmatprep.mubr.f32.mxu0 0.0
    %649 = vmatmul.mubr.f32.gmra.mrb[0].mxu0 %v505
    %v650 = vpop.f32.mrb[0].mxu0
    %v651 = vadd.f32 0.0, %v650
    %v652 = vpop.f32.mrb[0].mxu0
    %653 = vmatprep.mubr.f32.mxu0 0.0
    %654 = vmatmul.mubr.f32.gmra.mrb[0].mxu0 %v506
    %v655 = vpop.f32.mrb[0].mxu0
    %v656 = vadd.f32 0.0, %v655
    %v657 = vpop.f32.mrb[0].mxu0
    %658 = vdwg.mxu0
    %s659 = scalar_lea.vmem [#allocation3], 96
    %v660 = vld [vmem:[%s659] sm:$0xff]
    %v661 = vld [vmem:[%s659 + $0x8] sm:$0xff]
    %v662 = vld [vmem:[%s659 + $0x10] sm:$0xff]
    %v663 = vld [vmem:[%s659 + $0x18] sm:$0xff]
    %v664 = vld [vmem:[%s659 + $0x20] sm:$0xff]
    %v665 = vld [vmem:[%s659 + $0x28] sm:$0xff]
    %v666 = vadd.f32 %v660, %v574
    %v667 = vadd.f32 %v663, %v580
    %v668 = vxor.u32 %v666, 2147483648
    %v669 = vxor.u32 %v667, 2147483648
    %v670 = vmul.f32 %v668, 1.442695
    %v671 = vpow.pop %v670
    %v672 = vmul.f32 %v669, 1.442695
    %v673 = vpow.pop %v672
    %v674 = vadd.f32 %v671, 1.0
    %v675 = vadd.f32 %v673, 1.0
    %v676 = vrcp.pop %v674
    %v677 = vmul.f32 1.0, %v676
    %v678 = vrcp.pop %v675
    %v679 = vmul.f32 1.0, %v678
    %v680 = vadd.f32 %v661, %v576
    %v681 = vadd.f32 %v664, %v582
    %v682 = vxor.u32 %v680, 2147483648
    %v683 = vxor.u32 %v681, 2147483648
    %v684 = vmul.f32 %v682, 1.442695
    %v685 = vpow.pop %v684
    %v686 = vmul.f32 %v683, 1.442695
    %v687 = vpow.pop %v686
    %v688 = vadd.f32 %v685, 1.0
    %v689 = vadd.f32 %v687, 1.0
    %v690 = vrcp.pop %v688
    %v691 = vmul.f32 1.0, %v690
    %v692 = vrcp.pop %v689
    %v693 = vmul.f32 1.0, %v692
    %v694 = vadd.f32 %v651, %v102
    %v695 = vadd.f32 %v656, %v102
    %v696 = vmul.f32 %v677, %v694
    %v697 = vmul.f32 %v679, %v695
    %v698 = vadd.f32 %v662, %v696
    %v699 = vadd.f32 %v665, %v697
    %v700 = vtanh.pop %v698
    %v701 = vtanh.pop %v699
    %v702 = vsub.f32 %v505, %v700
    %v703 = vsub.f32 %v506, %v701
    %v704 = vmul.f32 %v691, %v702
    %v705 = vmul.f32 %v693, %v703
    %v706 = vadd.f32 %v700, %v704
    %v707 = vadd.f32 %v701, %v705
    %708 = vmatprep.subr.mxu0 %v50
    %709 = vmatpush1.msra.mxu0 %v49
    %710 = vmatprep.subr.mxu0 %v53
    %711 = vmatpush1.msra.mxu0 %v52
    %712 = vmatprep.subr.mxu0 %v56
    %713 = vmatpush1.msra.mxu0 %v55
    %714 = vmatprep.subr.mxu0 %v59
    %715 = vmatpush1.msra.mxu0 %v58
    %716 = vmatprep.subr.mxu0 %v62
    %717 = vmatpush1.msra.mxu0 %v61
    %718 = vmatprep.subr.mxu0 %v65
    %719 = vmatpush1.msra.mxu0 %v64
    %720 = vmatprep.subr.mxu0 %v68
    %721 = vmatpush1.msra.mxu0 %v67
    %722 = vmatprep.subr.mxu0 %v71
    %723 = vmatpush1.msra.mxu0 %v70
    %724 = vmatprep.subr.mxu0 %v74
    %725 = vmatpush1.msra.mxu0 %v73
    %726 = vmatprep.subr.mxu0 %v77
    %727 = vmatpush1.msra.mxu0 %v76
    %728 = vmatprep.subr.mxu0 %v80
    %729 = vmatpush1.msra.mxu0 %v79
    %730 = vmatprep.subr.mxu0 %v83
    %731 = vmatpush1.msra.mxu0 %v82
    %732 = vmatprep.subr.mxu0 %v86
    %733 = vmatpush1.msra.mxu0 %v85
    %734 = vmatprep.subr.mxu0 %v89
    %735 = vmatpush1.msra.mxu0 %v88
    %736 = vmatprep.subr.mxu0 %v92
    %737 = vmatpush1.msra.mxu0 %v91
    %738 = vmatprep.subr.mxu0 %v95
    %739 = vmatpush1.msra.mxu0 %v94
    %740 = vmatprep.subr.mxu0 0.0
    %741 = vmatpush1.msra.mxu0 0.0
    %742 = vmatprep.subr.mxu0 0.0
    %743 = vmatpush1.msra.mxu0 0.0
    %744 = vmatprep.subr.mxu0 0.0
    %745 = vmatpush1.msra.mxu0 0.0
    %746 = vmatprep.subr.mxu0 0.0
    %747 = vmatpush1.msra.mxu0 0.0
    %748 = vmatprep.subr.mxu0 0.0
    %749 = vmatpush1.msra.mxu0 0.0
    %750 = vmatprep.subr.mxu0 0.0
    %751 = vmatpush1.msra.mxu0 0.0
    %752 = vmatprep.subr.mxu0 0.0
    %753 = vmatpush1.msra.mxu0 0.0
    %754 = vmatprep.subr.mxu0 0.0
    %755 = vmatpush1.msra.mxu0 0.0
    %756 = vmatprep.subr.mxu0 0.0
    %757 = vmatpush1.msra.mxu0 0.0
    %758 = vmatprep.subr.mxu0 0.0
    %759 = vmatpush1.msra.mxu0 0.0
    %760 = vmatprep.subr.mxu0 0.0
    %761 = vmatpush1.msra.mxu0 0.0
    %762 = vmatprep.subr.mxu0 0.0
    %763 = vmatpush1.msra.mxu0 0.0
    %764 = vmatprep.subr.mxu0 0.0
    %765 = vmatpush1.msra.mxu0 0.0
    %766 = vmatprep.subr.mxu0 0.0
    %767 = vmatpush1.msra.mxu0 0.0
    %768 = vmatprep.subr.mxu0 0.0
    %769 = vmatpush1.msra.mxu0 0.0
    %770 = vmatprep.subr.mxu0 0.0
    %771 = vmatpush1.msra.mxu0 0.0
    %772 = vmatprep.mubr.f32.mxu0 0.0
    %773 = vmatmul.mubr.f32.gmra.mrb[0].mxu0 %v706
    %v774 = vpop.f32.mrb[0].mxu0
    %v775 = vadd.f32 0.0, %v774
    %v776 = vpop.f32.mrb[0].mxu0
    %v777 = vadd.f32 0.0, %v776
    %778 = vmatprep.mubr.f32.mxu0 0.0
    %779 = vmatmul.mubr.f32.gmra.mrb[0].mxu0 %v707
    %v780 = vpop.f32.mrb[0].mxu0
    %v781 = vadd.f32 0.0, %v780
    %v782 = vpop.f32.mrb[0].mxu0
    %v783 = vadd.f32 0.0, %v782
    %784 = vdwg.mxu0
    %785 = vmatprep.subr.mxu0 0.0
    %786 = vmatpush1.msra.mxu0 %v51
    %787 = vmatprep.subr.mxu0 0.0
    %788 = vmatpush1.msra.mxu0 %v54
    %789 = vmatprep.subr.mxu0 0.0
    %790 = vmatpush1.msra.mxu0 %v57
    %791 = vmatprep.subr.mxu0 0.0
    %792 = vmatpush1.msra.mxu0 %v60
    %793 = vmatprep.subr.mxu0 0.0
    %794 = vmatpush1.msra.mxu0 %v63
    %795 = vmatprep.subr.mxu0 0.0
    %796 = vmatpush1.msra.mxu0 %v66
    %797 = vmatprep.subr.mxu0 0.0
    %798 = vmatpush1.msra.mxu0 %v69
    %799 = vmatprep.subr.mxu0 0.0
    %800 = vmatpush1.msra.mxu0 %v72
    %801 = vmatprep.subr.mxu0 0.0
    %802 = vmatpush1.msra.mxu0 %v75
    %803 = vmatprep.subr.mxu0 0.0
    %804 = vmatpush1.msra.mxu0 %v78
    %805 = vmatprep.subr.mxu0 0.0
    %806 = vmatpush1.msra.mxu0 %v81
    %807 = vmatprep.subr.mxu0 0.0
    %808 = vmatpush1.msra.mxu0 %v84
    %809 = vmatprep.subr.mxu0 0.0
    %810 = vmatpush1.msra.mxu0 %v87
    %811 = vmatprep.subr.mxu0 0.0
    %812 = vmatpush1.msra.mxu0 %v90
    %813 = vmatprep.subr.mxu0 0.0
    %814 = vmatpush1.msra.mxu0 %v93
    %815 = vmatprep.subr.mxu0 0.0
    %816 = vmatpush1.msra.mxu0 %v96
    %817 = vmatprep.subr.mxu0 0.0
    %818 = vmatpush1.msra.mxu0 0.0
    %819 = vmatprep.subr.mxu0 0.0
    %820 = vmatpush1.msra.mxu0 0.0
    %821 = vmatprep.subr.mxu0 0.0
    %822 = vmatpush1.msra.mxu0 0.0
    %823 = vmatprep.subr.mxu0 0.0
    %824 = vmatpush1.msra.mxu0 0.0
    %825 = vmatprep.subr.mxu0 0.0
    %826 = vmatpush1.msra.mxu0 0.0
    %827 = vmatprep.subr.mxu0 0.0
    %828 = vmatpush1.msra.mxu0 0.0
    %829 = vmatprep.subr.mxu0 0.0
    %830 = vmatpush1.msra.mxu0 0.0
    %831 = vmatprep.subr.mxu0 0.0
    %832 = vmatpush1.msra.mxu0 0.0
    %833 = vmatprep.subr.mxu0 0.0
    %834 = vmatpush1.msra.mxu0 0.0
    %835 = vmatprep.subr.mxu0 0.0
    %836 = vmatpush1.msra.mxu0 0.0
    %837 = vmatprep.subr.mxu0 0.0
    %838 = vmatpush1.msra.mxu0 0.0
    %839 = vmatprep.subr.mxu0 0.0
    %840 = vmatpush1.msra.mxu0 0.0
    %841 = vmatprep.subr.mxu0 0.0
    %842 = vmatpush1.msra.mxu0 0.0
    %843 = vmatprep.subr.mxu0 0.0
    %844 = vmatpush1.msra.mxu0 0.0
    %845 = vmatprep.subr.mxu0 0.0
    %846 = vmatpush1.msra.mxu0 0.0
    %847 = vmatprep.subr.mxu0 0.0
    %848 = vmatpush1.msra.mxu0 0.0
    %849 = vmatprep.mubr.f32.mxu0 0.0
    %850 = vmatmul.mubr.f32.gmra.mrb[0].mxu0 %v706
    %v851 = vpop.f32.mrb[0].mxu0
    %v852 = vadd.f32 0.0, %v851
    %v853 = vpop.f32.mrb[0].mxu0
    %854 = vmatprep.mubr.f32.mxu0 0.0
    %855 = vmatmul.mubr.f32.gmra.mrb[0].mxu0 %v707
    %v856 = vpop.f32.mrb[0].mxu0
    %v857 = vadd.f32 0.0, %v856
    %v858 = vpop.f32.mrb[0].mxu0
    %859 = vdwg.mxu0
    %s860 = scalar_lea.vmem [#allocation3], 144
    %v861 = vld [vmem:[%s860] sm:$0xff]
    %v862 = vld [vmem:[%s860 + $0x8] sm:$0xff]
    %v863 = vld [vmem:[%s860 + $0x10] sm:$0xff]
    %v864 = vld [vmem:[%s860 + $0x18] sm:$0xff]
    %v865 = vld [vmem:[%s860 + $0x20] sm:$0xff]
    %v866 = vld [vmem:[%s860 + $0x28] sm:$0xff]
    %v867 = vadd.f32 %v861, %v775
    %v868 = vadd.f32 %v864, %v781
    %v869 = vxor.u32 %v867, 2147483648
    %v870 = vxor.u32 %v868, 2147483648
    %v871 = vmul.f32 %v869, 1.442695
    %v872 = vpow.pop %v871
    %v873 = vmul.f32 %v870, 1.442695
    %v874 = vpow.pop %v873
    %v875 = vadd.f32 %v872, 1.0
    %v876 = vadd.f32 %v874, 1.0
    %v877 = vrcp.pop %v875
    %v878 = vmul.f32 1.0, %v877
    %v879 = vrcp.pop %v876
    %v880 = vmul.f32 1.0, %v879
    %v881 = vadd.f32 %v862, %v777
    %v882 = vadd.f32 %v865, %v783
    %v883 = vxor.u32 %v881, 2147483648
    %v884 = vxor.u32 %v882, 2147483648
    %v885 = vmul.f32 %v883, 1.442695
    %v886 = vpow.pop %v885
    %v887 = vmul.f32 %v884, 1.442695
    %v888 = vpow.pop %v887
    %v889 = vadd.f32 %v886, 1.0
    %v890 = vadd.f32 %v888, 1.0
    %v891 = vrcp.pop %v889
    %v892 = vmul.f32 1.0, %v891
    %v893 = vrcp.pop %v890
    %v894 = vmul.f32 1.0, %v893
    %v895 = vadd.f32 %v852, %v102
    %v896 = vadd.f32 %v857, %v102
    %v897 = vmul.f32 %v878, %v895
    %v898 = vmul.f32 %v880, %v896
    %v899 = vadd.f32 %v863, %v897
    %v900 = vadd.f32 %v866, %v898
    %v901 = vtanh.pop %v899
    %v902 = vtanh.pop %v900
    %v903 = vsub.f32 %v706, %v901
    %v904 = vsub.f32 %v707, %v902
    %v905 = vmul.f32 %v892, %v903
    %v906 = vmul.f32 %v894, %v904
    %v907 = vadd.f32 %v901, %v905
    %v908 = vadd.f32 %v902, %v906
    %909 = vmatprep.subr.mxu0 %v50
    %910 = vmatpush1.msra.mxu0 %v49
    %911 = vmatprep.subr.mxu0 %v53
    %912 = vmatpush1.msra.mxu0 %v52
    %913 = vmatprep.subr.mxu0 %v56
    %914 = vmatpush1.msra.mxu0 %v55
    %915 = vmatprep.subr.mxu0 %v59
    %916 = vmatpush1.msra.mxu0 %v58
    %917 = vmatprep.subr.mxu0 %v62
    %918 = vmatpush1.msra.mxu0 %v61
    %919 = vmatprep.subr.mxu0 %v65
    %920 = vmatpush1.msra.mxu0 %v64
    %921 = vmatprep.subr.mxu0 %v68
    %922 = vmatpush1.msra.mxu0 %v67
    %923 = vmatprep.subr.mxu0 %v71
    %924 = vmatpush1.msra.mxu0 %v70
    %925 = vmatprep.subr.mxu0 %v74
    %926 = vmatpush1.msra.mxu0 %v73
    %927 = vmatprep.subr.mxu0 %v77
    %928 = vmatpush1.msra.mxu0 %v76
    %929 = vmatprep.subr.mxu0 %v80
    %930 = vmatpush1.msra.mxu0 %v79
    %931 = vmatprep.subr.mxu0 %v83
    %932 = vmatpush1.msra.mxu0 %v82
    %933 = vmatprep.subr.mxu0 %v86
    %934 = vmatpush1.msra.mxu0 %v85
    %935 = vmatprep.subr.mxu0 %v89
    %936 = vmatpush1.msra.mxu0 %v88
    %937 = vmatprep.subr.mxu0 %v92
    %938 = vmatpush1.msra.mxu0 %v91
    %939 = vmatprep.subr.mxu0 %v95
    %940 = vmatpush1.msra.mxu0 %v94
    %941 = vmatprep.subr.mxu0 0.0
    %942 = vmatpush1.msra.mxu0 0.0
    %943 = vmatprep.subr.mxu0 0.0
    %944 = vmatpush1.msra.mxu0 0.0
    %945 = vmatprep.subr.mxu0 0.0
    %946 = vmatpush1.msra.mxu0 0.0
    %947 = vmatprep.subr.mxu0 0.0
    %948 = vmatpush1.msra.mxu0 0.0
    %949 = vmatprep.subr.mxu0 0.0
    %950 = vmatpush1.msra.mxu0 0.0
    %951 = vmatprep.subr.mxu0 0.0
    %952 = vmatpush1.msra.mxu0 0.0
    %953 = vmatprep.subr.mxu0 0.0
    %954 = vmatpush1.msra.mxu0 0.0
    %955 = vmatprep.subr.mxu0 0.0
    %956 = vmatpush1.msra.mxu0 0.0
    %957 = vmatprep.subr.mxu0 0.0
    %958 = vmatpush1.msra.mxu0 0.0
    %959 = vmatprep.subr.mxu0 0.0
    %960 = vmatpush1.msra.mxu0 0.0
    %961 = vmatprep.subr.mxu0 0.0
    %962 = vmatpush1.msra.mxu0 0.0
    %963 = vmatprep.subr.mxu0 0.0
    %964 = vmatpush1.msra.mxu0 0.0
    %965 = vmatprep.subr.mxu0 0.0
    %966 = vmatpush1.msra.mxu0 0.0
    %967 = vmatprep.subr.mxu0 0.0
    %968 = vmatpush1.msra.mxu0 0.0
    %969 = vmatprep.subr.mxu0 0.0
    %970 = vmatpush1.msra.mxu0 0.0
    %971 = vmatprep.subr.mxu0 0.0
    %972 = vmatpush1.msra.mxu0 0.0
    %973 = vmatprep.mubr.f32.mxu0 0.0
    %974 = vmatmul.mubr.f32.gmra.mrb[0].mxu0 %v907
    %v975 = vpop.f32.mrb[0].mxu0
    %v976 = vadd.f32 0.0, %v975
    %v977 = vpop.f32.mrb[0].mxu0
    %v978 = vadd.f32 0.0, %v977
    %979 = vmatprep.mubr.f32.mxu0 0.0
    %980 = vmatmul.mubr.f32.gmra.mrb[0].mxu0 %v908
    %v981 = vpop.f32.mrb[0].mxu0
    %v982 = vadd.f32 0.0, %v981
    %v983 = vpop.f32.mrb[0].mxu0
    %v984 = vadd.f32 0.0, %v983
    %985 = vdwg.mxu0
    %986 = vmatprep.subr.mxu0 0.0
    %987 = vmatpush1.msra.mxu0 %v51
    %988 = vmatprep.subr.mxu0 0.0
    %989 = vmatpush1.msra.mxu0 %v54
    %990 = vmatprep.subr.mxu0 0.0
    %991 = vmatpush1.msra.mxu0 %v57
    %992 = vmatprep.subr.mxu0 0.0
    %993 = vmatpush1.msra.mxu0 %v60
    %994 = vmatprep.subr.mxu0 0.0
    %995 = vmatpush1.msra.mxu0 %v63
    %996 = vmatprep.subr.mxu0 0.0
    %997 = vmatpush1.msra.mxu0 %v66
    %998 = vmatprep.subr.mxu0 0.0
    %999 = vmatpush1.msra.mxu0 %v69
    %1000 = vmatprep.subr.mxu0 0.0
    %1001 = vmatpush1.msra.mxu0 %v72
    %1002 = vmatprep.subr.mxu0 0.0
    %1003 = vmatpush1.msra.mxu0 %v75
    %1004 = vmatprep.subr.mxu0 0.0
    %1005 = vmatpush1.msra.mxu0 %v78
    %1006 = vmatprep.subr.mxu0 0.0
    %1007 = vmatpush1.msra.mxu0 %v81
    %1008 = vmatprep.subr.mxu0 0.0
    %1009 = vmatpush1.msra.mxu0 %v84
    %1010 = vmatprep.subr.mxu0 0.0
    %1011 = vmatpush1.msra.mxu0 %v87
    %1012 = vmatprep.subr.mxu0 0.0
    %1013 = vmatpush1.msra.mxu0 %v90
    %1014 = vmatprep.subr.mxu0 0.0
    %1015 = vmatpush1.msra.mxu0 %v93
    %1016 = vmatprep.subr.mxu0 0.0
    %1017 = vmatpush1.msra.mxu0 %v96
    %1018 = vmatprep.subr.mxu0 0.0
    %1019 = vmatpush1.msra.mxu0 0.0
    %1020 = vmatprep.subr.mxu0 0.0
    %1021 = vmatpush1.msra.mxu0 0.0
    %1022 = vmatprep.subr.mxu0 0.0
    %1023 = vmatpush1.msra.mxu0 0.0
    %1024 = vmatprep.subr.mxu0 0.0
    %1025 = vmatpush1.msra.mxu0 0.0
    %1026 = vmatprep.subr.mxu0 0.0
    %1027 = vmatpush1.msra.mxu0 0.0
    %1028 = vmatprep.subr.mxu0 0.0
    %1029 = vmatpush1.msra.mxu0 0.0
    %1030 = vmatprep.subr.mxu0 0.0
    %1031 = vmatpush1.msra.mxu0 0.0
    %1032 = vmatprep.subr.mxu0 0.0
    %1033 = vmatpush1.msra.mxu0 0.0
    %1034 = vmatprep.subr.mxu0 0.0
    %1035 = vmatpush1.msra.mxu0 0.0
    %1036 = vmatprep.subr.mxu0 0.0
    %1037 = vmatpush1.msra.mxu0 0.0
    %1038 = vmatprep.subr.mxu0 0.0
    %1039 = vmatpush1.msra.mxu0 0.0
    %1040 = vmatprep.subr.mxu0 0.0
    %1041 = vmatpush1.msra.mxu0 0.0
    %1042 = vmatprep.subr.mxu0 0.0
    %1043 = vmatpush1.msra.mxu0 0.0
    %1044 = vmatprep.subr.mxu0 0.0
    %1045 = vmatpush1.msra.mxu0 0.0
    %1046 = vmatprep.subr.mxu0 0.0
    %1047 = vmatpush1.msra.mxu0 0.0
    %1048 = vmatprep.subr.mxu0 0.0
    %1049 = vmatpush1.msra.mxu0 0.0
    %1050 = vmatprep.mubr.f32.mxu0 0.0
    %1051 = vmatmul.mubr.f32.gmra.mrb[0].mxu0 %v907
    %v1052 = vpop.f32.mrb[0].mxu0
    %v1053 = vadd.f32 0.0, %v1052
    %v1054 = vpop.f32.mrb[0].mxu0
    %1055 = vmatprep.mubr.f32.mxu0 0.0
    %1056 = vmatmul.mubr.f32.gmra.mrb[0].mxu0 %v908
    %v1057 = vpop.f32.mrb[0].mxu0
    %v1058 = vadd.f32 0.0, %v1057
    %v1059 = vpop.f32.mrb[0].mxu0
    %1060 = vdwg.mxu0
    %s1061 = scalar_lea.vmem [#allocation3], 192
    %v1062 = vld [vmem:[%s1061] sm:$0xff]
    %v1063 = vld [vmem:[%s1061 + $0x8] sm:$0xff]
    %v1064 = vld [vmem:[%s1061 + $0x10] sm:$0xff]
    %v1065 = vld [vmem:[%s1061 + $0x18] sm:$0xff]
    %v1066 = vld [vmem:[%s1061 + $0x20] sm:$0xff]
    %v1067 = vld [vmem:[%s1061 + $0x28] sm:$0xff]
    %v1068 = vadd.f32 %v1062, %v976
    %v1069 = vadd.f32 %v1065, %v982
    %v1070 = vxor.u32 %v1068, 2147483648
    %v1071 = vxor.u32 %v1069, 2147483648
    %v1072 = vmul.f32 %v1070, 1.442695
    %v1073 = vpow.pop %v1072
    %v1074 = vmul.f32 %v1071, 1.442695
    %v1075 = vpow.pop %v1074
    %v1076 = vadd.f32 %v1073, 1.0
    %v1077 = vadd.f32 %v1075, 1.0
    %v1078 = vrcp.pop %v1076
    %v1079 = vmul.f32 1.0, %v1078
    %v1080 = vrcp.pop %v1077
    %v1081 = vmul.f32 1.0, %v1080
    %v1082 = vadd.f32 %v1063, %v978
    %v1083 = vadd.f32 %v1066, %v984
    %v1084 = vxor.u32 %v1082, 2147483648
    %v1085 = vxor.u32 %v1083, 2147483648
    %v1086 = vmul.f32 %v1084, 1.442695
    %v1087 = vpow.pop %v1086
    %v1088 = vmul.f32 %v1085, 1.442695
    %v1089 = vpow.pop %v1088
    %v1090 = vadd.f32 %v1087, 1.0
    %v1091 = vadd.f32 %v1089, 1.0
    %v1092 = vrcp.pop %v1090
    %v1093 = vmul.f32 1.0, %v1092
    %v1094 = vrcp.pop %v1091
    %v1095 = vmul.f32 1.0, %v1094
    %v1096 = vadd.f32 %v1053, %v102
    %v1097 = vadd.f32 %v1058, %v102
    %v1098 = vmul.f32 %v1079, %v1096
    %v1099 = vmul.f32 %v1081, %v1097
    %v1100 = vadd.f32 %v1064, %v1098
    %v1101 = vadd.f32 %v1067, %v1099
    %v1102 = vtanh.pop %v1100
    %v1103 = vtanh.pop %v1101
    %v1104 = vsub.f32 %v907, %v1102
    %v1105 = vsub.f32 %v908, %v1103
    %v1106 = vmul.f32 %v1093, %v1104
    %v1107 = vmul.f32 %v1095, %v1105
    %v1108 = vadd.f32 %v1102, %v1106
    %v1109 = vadd.f32 %v1103, %v1107
    %1110 = vmatprep.subr.mxu0 %v50
    %1111 = vmatpush1.msra.mxu0 %v49
    %1112 = vmatprep.subr.mxu0 %v53
    %1113 = vmatpush1.msra.mxu0 %v52
    %1114 = vmatprep.subr.mxu0 %v56
    %1115 = vmatpush1.msra.mxu0 %v55
    %1116 = vmatprep.subr.mxu0 %v59
    %1117 = vmatpush1.msra.mxu0 %v58
    %1118 = vmatprep.subr.mxu0 %v62
    %1119 = vmatpush1.msra.mxu0 %v61
    %1120 = vmatprep.subr.mxu0 %v65
    %1121 = vmatpush1.msra.mxu0 %v64
    %1122 = vmatprep.subr.mxu0 %v68
    %1123 = vmatpush1.msra.mxu0 %v67
    %1124 = vmatprep.subr.mxu0 %v71
    %1125 = vmatpush1.msra.mxu0 %v70
    %1126 = vmatprep.subr.mxu0 %v74
    %1127 = vmatpush1.msra.mxu0 %v73
    %1128 = vmatprep.subr.mxu0 %v77
    %1129 = vmatpush1.msra.mxu0 %v76
    %1130 = vmatprep.subr.mxu0 %v80
    %1131 = vmatpush1.msra.mxu0 %v79
    %1132 = vmatprep.subr.mxu0 %v83
    %1133 = vmatpush1.msra.mxu0 %v82
    %1134 = vmatprep.subr.mxu0 %v86
    %1135 = vmatpush1.msra.mxu0 %v85
    %1136 = vmatprep.subr.mxu0 %v89
    %1137 = vmatpush1.msra.mxu0 %v88
    %1138 = vmatprep.subr.mxu0 %v92
    %1139 = vmatpush1.msra.mxu0 %v91
    %1140 = vmatprep.subr.mxu0 %v95
    %1141 = vmatpush1.msra.mxu0 %v94
    %1142 = vmatprep.subr.mxu0 0.0
    %1143 = vmatpush1.msra.mxu0 0.0
    %1144 = vmatprep.subr.mxu0 0.0
    %1145 = vmatpush1.msra.mxu0 0.0
    %1146 = vmatprep.subr.mxu0 0.0
    %1147 = vmatpush1.msra.mxu0 0.0
    %1148 = vmatprep.subr.mxu0 0.0
    %1149 = vmatpush1.msra.mxu0 0.0
    %1150 = vmatprep.subr.mxu0 0.0
    %1151 = vmatpush1.msra.mxu0 0.0
    %1152 = vmatprep.subr.mxu0 0.0
    %1153 = vmatpush1.msra.mxu0 0.0
    %1154 = vmatprep.subr.mxu0 0.0
    %1155 = vmatpush1.msra.mxu0 0.0
    %1156 = vmatprep.subr.mxu0 0.0
    %1157 = vmatpush1.msra.mxu0 0.0
    %1158 = vmatprep.subr.mxu0 0.0
    %1159 = vmatpush1.msra.mxu0 0.0
    %1160 = vmatprep.subr.mxu0 0.0
    %1161 = vmatpush1.msra.mxu0 0.0
    %1162 = vmatprep.subr.mxu0 0.0
    %1163 = vmatpush1.msra.mxu0 0.0
    %1164 = vmatprep.subr.mxu0 0.0
    %1165 = vmatpush1.msra.mxu0 0.0
    %1166 = vmatprep.subr.mxu0 0.0
    %1167 = vmatpush1.msra.mxu0 0.0
    %1168 = vmatprep.subr.mxu0 0.0
    %1169 = vmatpush1.msra.mxu0 0.0
    %1170 = vmatprep.subr.mxu0 0.0
    %1171 = vmatpush1.msra.mxu0 0.0
    %1172 = vmatprep.subr.mxu0 0.0
    %1173 = vmatpush1.msra.mxu0 0.0
    %1174 = vmatprep.mubr.f32.mxu0 0.0
    %1175 = vmatmul.mubr.f32.gmra.mrb[0].mxu0 %v1108
    %v1176 = vpop.f32.mrb[0].mxu0
    %v1177 = vadd.f32 0.0, %v1176
    %v1178 = vpop.f32.mrb[0].mxu0
    %v1179 = vadd.f32 0.0, %v1178
    %1180 = vmatprep.mubr.f32.mxu0 0.0
    %1181 = vmatmul.mubr.f32.gmra.mrb[0].mxu0 %v1109
    %v1182 = vpop.f32.mrb[0].mxu0
    %v1183 = vadd.f32 0.0, %v1182
    %v1184 = vpop.f32.mrb[0].mxu0
    %v1185 = vadd.f32 0.0, %v1184
    %1186 = vdwg.mxu0
    %1187 = vmatprep.subr.mxu0 0.0
    %1188 = vmatpush1.msra.mxu0 %v51
    %1189 = vmatprep.subr.mxu0 0.0
    %1190 = vmatpush1.msra.mxu0 %v54
    %1191 = vmatprep.subr.mxu0 0.0
    %1192 = vmatpush1.msra.mxu0 %v57
    %1193 = vmatprep.subr.mxu0 0.0
    %1194 = vmatpush1.msra.mxu0 %v60
    %1195 = vmatprep.subr.mxu0 0.0
    %1196 = vmatpush1.msra.mxu0 %v63
    %1197 = vmatprep.subr.mxu0 0.0
    %1198 = vmatpush1.msra.mxu0 %v66
    %1199 = vmatprep.subr.mxu0 0.0
    %1200 = vmatpush1.msra.mxu0 %v69
    %1201 = vmatprep.subr.mxu0 0.0
    %1202 = vmatpush1.msra.mxu0 %v72
    %1203 = vmatprep.subr.mxu0 0.0
    %1204 = vmatpush1.msra.mxu0 %v75
    %1205 = vmatprep.subr.mxu0 0.0
    %1206 = vmatpush1.msra.mxu0 %v78
    %1207 = vmatprep.subr.mxu0 0.0
    %1208 = vmatpush1.msra.mxu0 %v81
    %1209 = vmatprep.subr.mxu0 0.0
    %1210 = vmatpush1.msra.mxu0 %v84
    %1211 = vmatprep.subr.mxu0 0.0
    %1212 = vmatpush1.msra.mxu0 %v87
    %1213 = vmatprep.subr.mxu0 0.0
    %1214 = vmatpush1.msra.mxu0 %v90
    %1215 = vmatprep.subr.mxu0 0.0
    %1216 = vmatpush1.msra.mxu0 %v93
    %1217 = vmatprep.subr.mxu0 0.0
    %1218 = vmatpush1.msra.mxu0 %v96
    %1219 = vmatprep.subr.mxu0 0.0
    %1220 = vmatpush1.msra.mxu0 0.0
    %1221 = vmatprep.subr.mxu0 0.0
    %1222 = vmatpush1.msra.mxu0 0.0
    %1223 = vmatprep.subr.mxu0 0.0
    %1224 = vmatpush1.msra.mxu0 0.0
    %1225 = vmatprep.subr.mxu0 0.0
    %1226 = vmatpush1.msra.mxu0 0.0
    %1227 = vmatprep.subr.mxu0 0.0
    %1228 = vmatpush1.msra.mxu0 0.0
    %1229 = vmatprep.subr.mxu0 0.0
    %1230 = vmatpush1.msra.mxu0 0.0
    %1231 = vmatprep.subr.mxu0 0.0
    %1232 = vmatpush1.msra.mxu0 0.0
    %1233 = vmatprep.subr.mxu0 0.0
    %1234 = vmatpush1.msra.mxu0 0.0
    %1235 = vmatprep.subr.mxu0 0.0
    %1236 = vmatpush1.msra.mxu0 0.0
    %1237 = vmatprep.subr.mxu0 0.0
    %1238 = vmatpush1.msra.mxu0 0.0
    %1239 = vmatprep.subr.mxu0 0.0
    %1240 = vmatpush1.msra.mxu0 0.0
    %1241 = vmatprep.subr.mxu0 0.0
    %1242 = vmatpush1.msra.mxu0 0.0
    %1243 = vmatprep.subr.mxu0 0.0
    %1244 = vmatpush1.msra.mxu0 0.0
    %1245 = vmatprep.subr.mxu0 0.0
    %1246 = vmatpush1.msra.mxu0 0.0
    %1247 = vmatprep.subr.mxu0 0.0
    %1248 = vmatpush1.msra.mxu0 0.0
    %1249 = vmatprep.subr.mxu0 0.0
    %1250 = vmatpush1.msra.mxu0 0.0
    %1251 = vmatprep.mubr.f32.mxu0 0.0
    %1252 = vmatmul.mubr.f32.gmra.mrb[0].mxu0 %v1108
    %v1253 = vpop.f32.mrb[0].mxu0
    %v1254 = vadd.f32 0.0, %v1253
    %v1255 = vpop.f32.mrb[0].mxu0
    %1256 = vmatprep.mubr.f32.mxu0 0.0
    %1257 = vmatmul.mubr.f32.gmra.mrb[0].mxu0 %v1109
    %v1258 = vpop.f32.mrb[0].mxu0
    %v1259 = vadd.f32 0.0, %v1258
    %v1260 = vpop.f32.mrb[0].mxu0
    %1261 = vdwg.mxu0
    %s1262 = scalar_lea.vmem [#allocation3], 240
    %v1263 = vld [vmem:[%s1262] sm:$0xff]
    %v1264 = vld [vmem:[%s1262 + $0x8] sm:$0xff]
    %v1265 = vld [vmem:[%s1262 + $0x10] sm:$0xff]
    %v1266 = vld [vmem:[%s1262 + $0x18] sm:$0xff]
    %v1267 = vld [vmem:[%s1262 + $0x20] sm:$0xff]
    %v1268 = vld [vmem:[%s1262 + $0x28] sm:$0xff]
    %v1269 = vadd.f32 %v1263, %v1177
    %v1270 = vadd.f32 %v1266, %v1183
    %v1271 = vxor.u32 %v1269, 2147483648
    %v1272 = vxor.u32 %v1270, 2147483648
    %v1273 = vmul.f32 %v1271, 1.442695
    %v1274 = vpow.pop %v1273
    %v1275 = vmul.f32 %v1272, 1.442695
    %v1276 = vpow.pop %v1275
    %v1277 = vadd.f32 %v1274, 1.0
    %v1278 = vadd.f32 %v1276, 1.0
    %v1279 = vrcp.pop %v1277
    %v1280 = vmul.f32 1.0, %v1279
    %v1281 = vrcp.pop %v1278
    %v1282 = vmul.f32 1.0, %v1281
    %v1283 = vadd.f32 %v1264, %v1179
    %v1284 = vadd.f32 %v1267, %v1185
    %v1285 = vxor.u32 %v1283, 2147483648
    %v1286 = vxor.u32 %v1284, 2147483648
    %v1287 = vmul.f32 %v1285, 1.442695
    %v1288 = vpow.pop %v1287
    %v1289 = vmul.f32 %v1286, 1.442695
    %v1290 = vpow.pop %v1289
    %v1291 = vadd.f32 %v1288, 1.0
    %v1292 = vadd.f32 %v1290, 1.0
    %v1293 = vrcp.pop %v1291
    %v1294 = vmul.f32 1.0, %v1293
    %v1295 = vrcp.pop %v1292
    %v1296 = vmul.f32 1.0, %v1295
    %v1297 = vadd.f32 %v1254, %v102
    %v1298 = vadd.f32 %v1259, %v102
    %v1299 = vmul.f32 %v1280, %v1297
    %v1300 = vmul.f32 %v1282, %v1298
    %v1301 = vadd.f32 %v1265, %v1299
    %v1302 = vadd.f32 %v1268, %v1300
    %v1303 = vtanh.pop %v1301
    %v1304 = vtanh.pop %v1302
    %v1305 = vsub.f32 %v1108, %v1303
    %v1306 = vsub.f32 %v1109, %v1304
    %v1307 = vmul.f32 %v1294, %v1305
    %v1308 = vmul.f32 %v1296, %v1306
    %v1309 = vadd.f32 %v1303, %v1307
    %v1310 = vadd.f32 %v1304, %v1308
    %1311 = vmatprep.subr.mxu0 %v50
    %1312 = vmatpush1.msra.mxu0 %v49
    %1313 = vmatprep.subr.mxu0 %v53
    %1314 = vmatpush1.msra.mxu0 %v52
    %1315 = vmatprep.subr.mxu0 %v56
    %1316 = vmatpush1.msra.mxu0 %v55
    %1317 = vmatprep.subr.mxu0 %v59
    %1318 = vmatpush1.msra.mxu0 %v58
    %1319 = vmatprep.subr.mxu0 %v62
    %1320 = vmatpush1.msra.mxu0 %v61
    %1321 = vmatprep.subr.mxu0 %v65
    %1322 = vmatpush1.msra.mxu0 %v64
    %1323 = vmatprep.subr.mxu0 %v68
    %1324 = vmatpush1.msra.mxu0 %v67
    %1325 = vmatprep.subr.mxu0 %v71
    %1326 = vmatpush1.msra.mxu0 %v70
    %1327 = vmatprep.subr.mxu0 %v74
    %1328 = vmatpush1.msra.mxu0 %v73
    %1329 = vmatprep.subr.mxu0 %v77
    %1330 = vmatpush1.msra.mxu0 %v76
    %1331 = vmatprep.subr.mxu0 %v80
    %1332 = vmatpush1.msra.mxu0 %v79
    %1333 = vmatprep.subr.mxu0 %v83
    %1334 = vmatpush1.msra.mxu0 %v82
    %1335 = vmatprep.subr.mxu0 %v86
    %1336 = vmatpush1.msra.mxu0 %v85
    %1337 = vmatprep.subr.mxu0 %v89
    %1338 = vmatpush1.msra.mxu0 %v88
    %1339 = vmatprep.subr.mxu0 %v92
    %1340 = vmatpush1.msra.mxu0 %v91
    %1341 = vmatprep.subr.mxu0 %v95
    %1342 = vmatpush1.msra.mxu0 %v94
    %1343 = vmatprep.subr.mxu0 0.0
    %1344 = vmatpush1.msra.mxu0 0.0
    %1345 = vmatprep.subr.mxu0 0.0
    %1346 = vmatpush1.msra.mxu0 0.0
    %1347 = vmatprep.subr.mxu0 0.0
    %1348 = vmatpush1.msra.mxu0 0.0
    %1349 = vmatprep.subr.mxu0 0.0
    %1350 = vmatpush1.msra.mxu0 0.0
    %1351 = vmatprep.subr.mxu0 0.0
    %1352 = vmatpush1.msra.mxu0 0.0
    %1353 = vmatprep.subr.mxu0 0.0
    %1354 = vmatpush1.msra.mxu0 0.0
    %1355 = vmatprep.subr.mxu0 0.0
    %1356 = vmatpush1.msra.mxu0 0.0
    %1357 = vmatprep.subr.mxu0 0.0
    %1358 = vmatpush1.msra.mxu0 0.0
    %1359 = vmatprep.subr.mxu0 0.0
    %1360 = vmatpush1.msra.mxu0 0.0
    %1361 = vmatprep.subr.mxu0 0.0
    %1362 = vmatpush1.msra.mxu0 0.0
    %1363 = vmatprep.subr.mxu0 0.0
    %1364 = vmatpush1.msra.mxu0 0.0
    %1365 = vmatprep.subr.mxu0 0.0
    %1366 = vmatpush1.msra.mxu0 0.0
    %1367 = vmatprep.subr.mxu0 0.0
    %1368 = vmatpush1.msra.mxu0 0.0
    %1369 = vmatprep.subr.mxu0 0.0
    %1370 = vmatpush1.msra.mxu0 0.0
    %1371 = vmatprep.subr.mxu0 0.0
    %1372 = vmatpush1.msra.mxu0 0.0
    %1373 = vmatprep.subr.mxu0 0.0
    %1374 = vmatpush1.msra.mxu0 0.0
    %1375 = vmatprep.mubr.f32.mxu0 0.0
    %1376 = vmatmul.mubr.f32.gmra.mrb[0].mxu0 %v1309
    %v1377 = vpop.f32.mrb[0].mxu0
    %v1378 = vadd.f32 0.0, %v1377
    %v1379 = vpop.f32.mrb[0].mxu0
    %v1380 = vadd.f32 0.0, %v1379
    %1381 = vmatprep.mubr.f32.mxu0 0.0
    %1382 = vmatmul.mubr.f32.gmra.mrb[0].mxu0 %v1310
    %v1383 = vpop.f32.mrb[0].mxu0
    %v1384 = vadd.f32 0.0, %v1383
    %v1385 = vpop.f32.mrb[0].mxu0
    %v1386 = vadd.f32 0.0, %v1385
    %1387 = vdwg.mxu0
    %1388 = vmatprep.subr.mxu0 0.0
    %1389 = vmatpush1.msra.mxu0 %v51
    %1390 = vmatprep.subr.mxu0 0.0
    %1391 = vmatpush1.msra.mxu0 %v54
    %1392 = vmatprep.subr.mxu0 0.0
    %1393 = vmatpush1.msra.mxu0 %v57
    %1394 = vmatprep.subr.mxu0 0.0
    %1395 = vmatpush1.msra.mxu0 %v60
    %1396 = vmatprep.subr.mxu0 0.0
    %1397 = vmatpush1.msra.mxu0 %v63
    %1398 = vmatprep.subr.mxu0 0.0
    %1399 = vmatpush1.msra.mxu0 %v66
    %1400 = vmatprep.subr.mxu0 0.0
    %1401 = vmatpush1.msra.mxu0 %v69
    %1402 = vmatprep.subr.mxu0 0.0
    %1403 = vmatpush1.msra.mxu0 %v72
    %1404 = vmatprep.subr.mxu0 0.0
    %1405 = vmatpush1.msra.mxu0 %v75
    %1406 = vmatprep.subr.mxu0 0.0
    %1407 = vmatpush1.msra.mxu0 %v78
    %1408 = vmatprep.subr.mxu0 0.0
    %1409 = vmatpush1.msra.mxu0 %v81
    %1410 = vmatprep.subr.mxu0 0.0
    %1411 = vmatpush1.msra.mxu0 %v84
    %1412 = vmatprep.subr.mxu0 0.0
    %1413 = vmatpush1.msra.mxu0 %v87
    %1414 = vmatprep.subr.mxu0 0.0
    %1415 = vmatpush1.msra.mxu0 %v90
    %1416 = vmatprep.subr.mxu0 0.0
    %1417 = vmatpush1.msra.mxu0 %v93
    %1418 = vmatprep.subr.mxu0 0.0
    %1419 = vmatpush1.msra.mxu0 %v96
    %1420 = vmatprep.subr.mxu0 0.0
    %1421 = vmatpush1.msra.mxu0 0.0
    %1422 = vmatprep.subr.mxu0 0.0
    %1423 = vmatpush1.msra.mxu0 0.0
    %1424 = vmatprep.subr.mxu0 0.0
    %1425 = vmatpush1.msra.mxu0 0.0
    %1426 = vmatprep.subr.mxu0 0.0
    %1427 = vmatpush1.msra.mxu0 0.0
    %1428 = vmatprep.subr.mxu0 0.0
    %1429 = vmatpush1.msra.mxu0 0.0
    %1430 = vmatprep.subr.mxu0 0.0
    %1431 = vmatpush1.msra.mxu0 0.0
    %1432 = vmatprep.subr.mxu0 0.0
    %1433 = vmatpush1.msra.mxu0 0.0
    %1434 = vmatprep.subr.mxu0 0.0
    %1435 = vmatpush1.msra.mxu0 0.0
    %1436 = vmatprep.subr.mxu0 0.0
    %1437 = vmatpush1.msra.mxu0 0.0
    %1438 = vmatprep.subr.mxu0 0.0
    %1439 = vmatpush1.msra.mxu0 0.0
    %1440 = vmatprep.subr.mxu0 0.0
    %1441 = vmatpush1.msra.mxu0 0.0
    %1442 = vmatprep.subr.mxu0 0.0
    %1443 = vmatpush1.msra.mxu0 0.0
    %1444 = vmatprep.subr.mxu0 0.0
    %1445 = vmatpush1.msra.mxu0 0.0
    %1446 = vmatprep.subr.mxu0 0.0
    %1447 = vmatpush1.msra.mxu0 0.0
    %1448 = vmatprep.subr.mxu0 0.0
    %1449 = vmatpush1.msra.mxu0 0.0
    %1450 = vmatprep.subr.mxu0 0.0
    %1451 = vmatpush1.msra.mxu0 0.0
    %1452 = vmatprep.mubr.f32.mxu0 0.0
    %1453 = vmatmul.mubr.f32.gmra.mrb[0].mxu0 %v1309
    %v1454 = vpop.f32.mrb[0].mxu0
    %v1455 = vadd.f32 0.0, %v1454
    %v1456 = vpop.f32.mrb[0].mxu0
    %1457 = vmatprep.mubr.f32.mxu0 0.0
    %1458 = vmatmul.mubr.f32.gmra.mrb[0].mxu0 %v1310
    %v1459 = vpop.f32.mrb[0].mxu0
    %v1460 = vadd.f32 0.0, %v1459
    %v1461 = vpop.f32.mrb[0].mxu0
    %1462 = vdwg.mxu0
    %s1463 = scalar_lea.vmem [#allocation3], 288
    %v1464 = vld [vmem:[%s1463] sm:$0xff]
    %v1465 = vld [vmem:[%s1463 + $0x8] sm:$0xff]
    %v1466 = vld [vmem:[%s1463 + $0x10] sm:$0xff]
    %v1467 = vld [vmem:[%s1463 + $0x18] sm:$0xff]
    %v1468 = vld [vmem:[%s1463 + $0x20] sm:$0xff]
    %v1469 = vld [vmem:[%s1463 + $0x28] sm:$0xff]
    %v1470 = vadd.f32 %v1464, %v1378
    %v1471 = vadd.f32 %v1467, %v1384
    %v1472 = vxor.u32 %v1470, 2147483648
    %v1473 = vxor.u32 %v1471, 2147483648
    %v1474 = vmul.f32 %v1472, 1.442695
    %v1475 = vpow.pop %v1474
    %v1476 = vmul.f32 %v1473, 1.442695
    %v1477 = vpow.pop %v1476
    %v1478 = vadd.f32 %v1475, 1.0
    %v1479 = vadd.f32 %v1477, 1.0
    %v1480 = vrcp.pop %v1478
    %v1481 = vmul.f32 1.0, %v1480
    %v1482 = vrcp.pop %v1479
    %v1483 = vmul.f32 1.0, %v1482
    %v1484 = vadd.f32 %v1465, %v1380
    %v1485 = vadd.f32 %v1468, %v1386
    %v1486 = vxor.u32 %v1484, 2147483648
    %v1487 = vxor.u32 %v1485, 2147483648
    %v1488 = vmul.f32 %v1486, 1.442695
    %v1489 = vpow.pop %v1488
    %v1490 = vmul.f32 %v1487, 1.442695
    %v1491 = vpow.pop %v1490
    %v1492 = vadd.f32 %v1489, 1.0
    %v1493 = vadd.f32 %v1491, 1.0
    %v1494 = vrcp.pop %v1492
    %v1495 = vmul.f32 1.0, %v1494
    %v1496 = vrcp.pop %v1493
    %v1497 = vmul.f32 1.0, %v1496
    %v1498 = vadd.f32 %v1455, %v102
    %v1499 = vadd.f32 %v1460, %v102
    %v1500 = vmul.f32 %v1481, %v1498
    %v1501 = vmul.f32 %v1483, %v1499
    %v1502 = vadd.f32 %v1466, %v1500
    %v1503 = vadd.f32 %v1469, %v1501
    %v1504 = vtanh.pop %v1502
    %v1505 = vtanh.pop %v1503
    %v1506 = vsub.f32 %v1309, %v1504
    %v1507 = vsub.f32 %v1310, %v1505
    %v1508 = vmul.f32 %v1495, %v1506
    %v1509 = vmul.f32 %v1497, %v1507
    %v1510 = vadd.f32 %v1504, %v1508
    %v1511 = vadd.f32 %v1505, %v1509
    %1512 = vmatprep.subr.mxu0 %v50
    %1513 = vmatpush1.msra.mxu0 %v49
    %1514 = vmatprep.subr.mxu0 %v53
    %1515 = vmatpush1.msra.mxu0 %v52
    %1516 = vmatprep.subr.mxu0 %v56
    %1517 = vmatpush1.msra.mxu0 %v55
    %1518 = vmatprep.subr.mxu0 %v59
    %1519 = vmatpush1.msra.mxu0 %v58
    %1520 = vmatprep.subr.mxu0 %v62
    %1521 = vmatpush1.msra.mxu0 %v61
    %1522 = vmatprep.subr.mxu0 %v65
    %1523 = vmatpush1.msra.mxu0 %v64
    %1524 = vmatprep.subr.mxu0 %v68
    %1525 = vmatpush1.msra.mxu0 %v67
    %1526 = vmatprep.subr.mxu0 %v71
    %1527 = vmatpush1.msra.mxu0 %v70
    %1528 = vmatprep.subr.mxu0 %v74
    %1529 = vmatpush1.msra.mxu0 %v73
    %1530 = vmatprep.subr.mxu0 %v77
    %1531 = vmatpush1.msra.mxu0 %v76
    %1532 = vmatprep.subr.mxu0 %v80
    %1533 = vmatpush1.msra.mxu0 %v79
    %1534 = vmatprep.subr.mxu0 %v83
    %1535 = vmatpush1.msra.mxu0 %v82
    %1536 = vmatprep.subr.mxu0 %v86
    %1537 = vmatpush1.msra.mxu0 %v85
    %1538 = vmatprep.subr.mxu0 %v89
    %1539 = vmatpush1.msra.mxu0 %v88
    %1540 = vmatprep.subr.mxu0 %v92
    %1541 = vmatpush1.msra.mxu0 %v91
    %1542 = vmatprep.subr.mxu0 %v95
    %1543 = vmatpush1.msra.mxu0 %v94
    %1544 = vmatprep.subr.mxu0 0.0
    %1545 = vmatpush1.msra.mxu0 0.0
    %1546 = vmatprep.subr.mxu0 0.0
    %1547 = vmatpush1.msra.mxu0 0.0
    %1548 = vmatprep.subr.mxu0 0.0
    %1549 = vmatpush1.msra.mxu0 0.0
    %1550 = vmatprep.subr.mxu0 0.0
    %1551 = vmatpush1.msra.mxu0 0.0
    %1552 = vmatprep.subr.mxu0 0.0
    %1553 = vmatpush1.msra.mxu0 0.0
    %1554 = vmatprep.subr.mxu0 0.0
    %1555 = vmatpush1.msra.mxu0 0.0
    %1556 = vmatprep.subr.mxu0 0.0
    %1557 = vmatpush1.msra.mxu0 0.0
    %1558 = vmatprep.subr.mxu0 0.0
    %1559 = vmatpush1.msra.mxu0 0.0
    %1560 = vmatprep.subr.mxu0 0.0
    %1561 = vmatpush1.msra.mxu0 0.0
    %1562 = vmatprep.subr.mxu0 0.0
    %1563 = vmatpush1.msra.mxu0 0.0
    %1564 = vmatprep.subr.mxu0 0.0
    %1565 = vmatpush1.msra.mxu0 0.0
    %1566 = vmatprep.subr.mxu0 0.0
    %1567 = vmatpush1.msra.mxu0 0.0
    %1568 = vmatprep.subr.mxu0 0.0
    %1569 = vmatpush1.msra.mxu0 0.0
    %1570 = vmatprep.subr.mxu0 0.0
    %1571 = vmatpush1.msra.mxu0 0.0
    %1572 = vmatprep.subr.mxu0 0.0
    %1573 = vmatpush1.msra.mxu0 0.0
    %1574 = vmatprep.subr.mxu0 0.0
    %1575 = vmatpush1.msra.mxu0 0.0
    %1576 = vmatprep.mubr.f32.mxu0 0.0
    %1577 = vmatmul.mubr.f32.gmra.mrb[0].mxu0 %v1510
    %v1578 = vpop.f32.mrb[0].mxu0
    %v1579 = vadd.f32 0.0, %v1578
    %v1580 = vpop.f32.mrb[0].mxu0
    %v1581 = vadd.f32 0.0, %v1580
    %1582 = vmatprep.mubr.f32.mxu0 0.0
    %1583 = vmatmul.mubr.f32.gmra.mrb[0].mxu0 %v1511
    %v1584 = vpop.f32.mrb[0].mxu0
    %v1585 = vadd.f32 0.0, %v1584
    %v1586 = vpop.f32.mrb[0].mxu0
    %v1587 = vadd.f32 0.0, %v1586
    %1588 = vdwg.mxu0
    %1589 = vmatprep.subr.mxu0 0.0
    %1590 = vmatpush1.msra.mxu0 %v51
    %1591 = vmatprep.subr.mxu0 0.0
    %1592 = vmatpush1.msra.mxu0 %v54
    %1593 = vmatprep.subr.mxu0 0.0
    %1594 = vmatpush1.msra.mxu0 %v57
    %1595 = vmatprep.subr.mxu0 0.0
    %1596 = vmatpush1.msra.mxu0 %v60
    %1597 = vmatprep.subr.mxu0 0.0
    %1598 = vmatpush1.msra.mxu0 %v63
    %1599 = vmatprep.subr.mxu0 0.0
    %1600 = vmatpush1.msra.mxu0 %v66
    %1601 = vmatprep.subr.mxu0 0.0
    %1602 = vmatpush1.msra.mxu0 %v69
    %1603 = vmatprep.subr.mxu0 0.0
    %1604 = vmatpush1.msra.mxu0 %v72
    %1605 = vmatprep.subr.mxu0 0.0
    %1606 = vmatpush1.msra.mxu0 %v75
    %1607 = vmatprep.subr.mxu0 0.0
    %1608 = vmatpush1.msra.mxu0 %v78
    %1609 = vmatprep.subr.mxu0 0.0
    %1610 = vmatpush1.msra.mxu0 %v81
    %1611 = vmatprep.subr.mxu0 0.0
    %1612 = vmatpush1.msra.mxu0 %v84
    %1613 = vmatprep.subr.mxu0 0.0
    %1614 = vmatpush1.msra.mxu0 %v87
    %1615 = vmatprep.subr.mxu0 0.0
    %1616 = vmatpush1.msra.mxu0 %v90
    %1617 = vmatprep.subr.mxu0 0.0
    %1618 = vmatpush1.msra.mxu0 %v93
    %1619 = vmatprep.subr.mxu0 0.0
    %1620 = vmatpush1.msra.mxu0 %v96
    %1621 = vmatprep.subr.mxu0 0.0
    %1622 = vmatpush1.msra.mxu0 0.0
    %1623 = vmatprep.subr.mxu0 0.0
    %1624 = vmatpush1.msra.mxu0 0.0
    %1625 = vmatprep.subr.mxu0 0.0
    %1626 = vmatpush1.msra.mxu0 0.0
    %1627 = vmatprep.subr.mxu0 0.0
    %1628 = vmatpush1.msra.mxu0 0.0
    %1629 = vmatprep.subr.mxu0 0.0
    %1630 = vmatpush1.msra.mxu0 0.0
    %1631 = vmatprep.subr.mxu0 0.0
    %1632 = vmatpush1.msra.mxu0 0.0
    %1633 = vmatprep.subr.mxu0 0.0
    %1634 = vmatpush1.msra.mxu0 0.0
    %1635 = vmatprep.subr.mxu0 0.0
    %1636 = vmatpush1.msra.mxu0 0.0
    %1637 = vmatprep.subr.mxu0 0.0
    %1638 = vmatpush1.msra.mxu0 0.0
    %1639 = vmatprep.subr.mxu0 0.0
    %1640 = vmatpush1.msra.mxu0 0.0
    %1641 = vmatprep.subr.mxu0 0.0
    %1642 = vmatpush1.msra.mxu0 0.0
    %1643 = vmatprep.subr.mxu0 0.0
    %1644 = vmatpush1.msra.mxu0 0.0
    %1645 = vmatprep.subr.mxu0 0.0
    %1646 = vmatpush1.msra.mxu0 0.0
    %1647 = vmatprep.subr.mxu0 0.0
    %1648 = vmatpush1.msra.mxu0 0.0
    %1649 = vmatprep.subr.mxu0 0.0
    %1650 = vmatpush1.msra.mxu0 0.0
    %1651 = vmatprep.subr.mxu0 0.0
    %1652 = vmatpush1.msra.mxu0 0.0
    %1653 = vmatprep.mubr.f32.mxu0 0.0
    %1654 = vmatmul.mubr.f32.gmra.mrb[0].mxu0 %v1510
    %v1655 = vpop.f32.mrb[0].mxu0
    %v1656 = vadd.f32 0.0, %v1655
    %v1657 = vpop.f32.mrb[0].mxu0
    %1658 = vmatprep.mubr.f32.mxu0 0.0
    %1659 = vmatmul.mubr.f32.gmra.mrb[0].mxu0 %v1511
    %v1660 = vpop.f32.mrb[0].mxu0
    %v1661 = vadd.f32 0.0, %v1660
    %v1662 = vpop.f32.mrb[0].mxu0
    %1663 = vdwg.mxu0
    %s1664 = scalar_lea.vmem [#allocation3], 336
    %v1665 = vld [vmem:[%s1664] sm:$0xff]
    %v1666 = vld [vmem:[%s1664 + $0x8] sm:$0xff]
    %v1667 = vld [vmem:[%s1664 + $0x10] sm:$0xff]
    %v1668 = vld [vmem:[%s1664 + $0x18] sm:$0xff]
    %v1669 = vld [vmem:[%s1664 + $0x20] sm:$0xff]
    %v1670 = vld [vmem:[%s1664 + $0x28] sm:$0xff]
    %v1671 = vadd.f32 %v1665, %v1579
    %v1672 = vadd.f32 %v1668, %v1585
    %v1673 = vxor.u32 %v1671, 2147483648
    %v1674 = vxor.u32 %v1672, 2147483648
    %v1675 = vmul.f32 %v1673, 1.442695
    %v1676 = vpow.pop %v1675
    %v1677 = vmul.f32 %v1674, 1.442695
    %v1678 = vpow.pop %v1677
    %v1679 = vadd.f32 %v1676, 1.0
    %v1680 = vadd.f32 %v1678, 1.0
    %v1681 = vrcp.pop %v1679
    %v1682 = vmul.f32 1.0, %v1681
    %v1683 = vrcp.pop %v1680
    %v1684 = vmul.f32 1.0, %v1683
    %v1685 = vadd.f32 %v1666, %v1581
    %v1686 = vadd.f32 %v1669, %v1587
    %v1687 = vxor.u32 %v1685, 2147483648
    %v1688 = vxor.u32 %v1686, 2147483648
    %v1689 = vmul.f32 %v1687, 1.442695
    %v1690 = vpow.pop %v1689
    %v1691 = vmul.f32 %v1688, 1.442695
    %v1692 = vpow.pop %v1691
    %v1693 = vadd.f32 %v1690, 1.0
    %v1694 = vadd.f32 %v1692, 1.0
    %v1695 = vrcp.pop %v1693
    %v1696 = vmul.f32 1.0, %v1695
    %v1697 = vrcp.pop %v1694
    %v1698 = vmul.f32 1.0, %v1697
    %v1699 = vadd.f32 %v1656, %v102
    %v1700 = vadd.f32 %v1661, %v102
    %v1701 = vmul.f32 %v1682, %v1699
    %v1702 = vmul.f32 %v1684, %v1700
    %v1703 = vadd.f32 %v1667, %v1701
    %v1704 = vadd.f32 %v1670, %v1702
    %v1705 = vtanh.pop %v1703
    %v1706 = vtanh.pop %v1704
    %v1707 = vsub.f32 %v1510, %v1705
    %v1708 = vsub.f32 %v1511, %v1706
    %v1709 = vmul.f32 %v1696, %v1707
    %v1710 = vmul.f32 %v1698, %v1708
    %v1711 = vadd.f32 %v1705, %v1709
    %v1712 = vadd.f32 %v1706, %v1710
    %1713 = vst [vmem:[#allocation2] sm:$0xff] %v1711
    %1714 = vst [vmem:[#allocation2 + $0x8] sm:$0xff] %v1712
    // Predicated region
    $region26: #{tpu_custom_call.1} parent=1 // pred_check
      %p1715 = pneg %p43
    $region27: #{tpu_custom_call.1} parent=1 // pred_check_branch
      %1717 = sbr.rel (%p1715) target = $region29
    $region28: #{tpu_custom_call.1} parent=1 // pred_region
      %1718 = vst [vmem:[#allocation8] sm:$0xff] %v1711
      %1719 = vst [vmem:[#allocation8 + $0x8] sm:$0xff] %v1712
    $region29: #{tpu_custom_call.1} parent=1 // pred_fallthru
      _
    // Predicated region
    $region30: #{tpu_custom_call.1} parent=1 // pred_check
      _
    $region31: #{tpu_custom_call.1} parent=1 // pred_check_branch
      %1721 = sbr.rel (0) target = $region33
    $region32: #{tpu_custom_call.1} parent=1 // pred_region
      %s1723 = ssub.s32 256, 256
      %1724 = vsyncadd [#allocation5], %s1723
      %s1725 = sshll.u32 [#allocation8], 4
      %s1726 = int_to_ptr.vmem [resolvable:$true] %s1725
      %1731 = dma.vmem_to_hbm [thread:$0]  %s1726, 256, %s3, [#allocation5], 128, 128, 8
    $region33: #{tpu_custom_call.1} parent=1 // pred_fallthru
      _
    // Predicated region
    $region34: #{tpu_custom_call.1} parent=1 // pred_check
      _
    $region35: #{tpu_custom_call.1} parent=1 // pred_check_branch
      %1733 = sbr.rel (0) target = $region37
    $region36: #{tpu_custom_call.1} parent=1 // pred_region
      %1734 = dma.done [#allocation5], 256
    $region37: #{tpu_custom_call.1} parent=1 // pred_fallthru
      _
    %1735 = vsyncpa [#allocation4], 1
    %1736 = vsyncpa [#allocation7], 1
    %1737 = vsyncpa [#allocation5], 1

</llo_original>
